<compile_context>
chip_gen: v5e
topology: v5e:2x2
jax: 0.10.0
libtpu: 0.0.40
codegen_flags: <defaults>
</compile_context>

<pallas_src>
import functools
import math

import jax
import jax.numpy as jnp
from jax import lax
from jax.experimental import pallas as pl
from jax.experimental.pallas import tpu as pltpu


def _round_up(x, m):
    return ((x + m - 1) // m) * m


def _phase_taps_1d(K, s, p, d):
    """Per output phase r in [0, s): list of (k, b) such that the transposed
    conv output oh = s*q + r reads input index ih = q + b through tap k."""
    taps = []
    for r in range(s):
        cur = []
        for k in range(K):
            num = r + p - k * d
            if num % s == 0:          # floor-mod: also correct for negative num
                cur.append((k, num // s))
        taps.append(cur)
    return taps


def _polyphase_kernel(x_ref, w_ref, b_ref, o_ref, acc_ref, *,
                      tap_plan, TQ, QW, KP, CP):
    # x_ref  : (1, Hpad, Wpad, KP)      packed [re|im] input plane, one image
    # w_ref  : (KH*KW, KP, CP)          per-tap real-embedding weight blocks
    # b_ref  : (1, CP)                  packed effective bias
    # o_ref  : (1, n_phase, TQ*QW, CP)  lane-dense per-phase output rows
    # acc_ref: VMEM (TQ*QW, CP) f32     scratch accumulator
    t = pl.program_id(1)
    row0 = t * TQ
    M = TQ * QW
    bias = b_ref[...]                                  # (1, CP), hoisted load
    for ph, taps in enumerate(tap_plan):               # static unroll: phases
        n = len(taps)
        if n == 0:                                     # phase with no real taps
            o_ref[0, ph] = jnp.broadcast_to(bias, (M, CP))
            continue
        for j, (ti, sh, sw) in enumerate(taps):        # static unroll: real taps
            # Contiguous window of the *un-dilated* padded input; only the
            # leading (row) dim has a dynamic start.
            patch = x_ref[0, pl.ds(row0 + sh, TQ), sw:sw + QW, :]
            contrib = jnp.dot(patch.reshape(M, KP), w_ref[ti],
                              preferred_element_type=jnp.float32)
            if n == 1:
                o_ref[0, ph] = contrib + bias
            elif j == 0:
                acc_ref[...] = contrib + bias          # fold bias into init
            elif j == n - 1:
                o_ref[0, ph] = acc_ref[...] + contrib  # last tap writes output
            else:
                acc_ref[...] += contrib


def complex_conv_transpose2d(x, weight, bias, stride=(1, 1), padding=(0, 0),
                             output_padding=(0, 0), dilation=(1, 1), groups=1):
    """PyTorch-semantics complex ConvTranspose2d (groups=1) via Pallas."""
    assert groups == 1  # TODO(synk): grouped complex transposed conv not implemented.
    N, C_in, H, W = x.shape
    C_in_w, C_out, KH, KW = weight.shape
    assert C_in == C_in_w, "weight must be (C_in, C_out, KH, KW)"
    sH, sW = stride
    pH, pW = padding
    opH, opW = output_padding
    dH, dW = dilation

    H_out = (H - 1) * sH - 2 * pH + dH * (KH - 1) + opH + 1
    W_out = (W - 1) * sW - 2 * pW + dW * (KW - 1) + opW + 1
    assert H_out > 0 and W_out > 0

    n_phase = sH * sW
    Qh = -(-H_out // sH)            # output rows per phase (upper bound)
    Qw = -(-W_out // sW)            # output cols per phase (upper bound)

    # ---- static polyphase tap tables (pure Python) ----
    taps_h = _phase_taps_1d(KH, sH, pH, dH)
    taps_w = _phase_taps_1d(KW, sW, pW, dW)
    pad_t = max(0, -min(b for tl in taps_h for (_, b) in tl))
    pad_l = max(0, -min(b for tl in taps_w for (_, b) in tl))

    # Row tiling: keep each tile's flattened pixel count (TQ*Qw) a multiple of
    # 8 so reshapes / output stores stay sublane-aligned, cap at ~1024 output
    # pixels per tile (≥85% of HBM roofline per the tiling table), and add a
    # spatial "parallel" grid axis.
    tq_step = 8 // math.gcd(Qw, 8)
    max_rows = max(1, 1024 // max(Qw, 1))
    TQ = max(tq_step, (max_rows // tq_step) * tq_step)
    if TQ >= Qh:
        TQ = Qh                     # single full-dim tile (block == array dim)
        n_tiles = 1
    else:
        n_tiles = -(-Qh // TQ)
    Qh_pad = TQ * n_tiles

    max_sh = max(b + pad_t for tl in taps_h for (_, b) in tl)
    max_sw = max(b + pad_l for tl in taps_w for (_, b) in tl)
    pad_b = max(0, max_sh + Qh_pad - (H + pad_t))
    pad_r = max(0, max_sw + Qw - (W + pad_l))
    Hpad = H + pad_t + pad_b
    Wpad = W + pad_l + pad_r

    KP = _round_up(2 * C_in, 8)                  # packed [re|im] K dim
    CP = _round_up(2 * C_out, 128)               # packed [re|im] lane dim

    # Static per-phase plan: (tap_index, row_start, col_start).
    tap_plan = []
    for rh in range(sH):
        for rw in range(sW):
            plan = []
            for (kh, bh) in taps_h[rh]:
                for (kw, bw) in taps_w[rw]:
                    plan.append((kh * KW + kw, bh + pad_t, bw + pad_l))
            tap_plan.append(tuple(plan))
    tap_plan = tuple(tap_plan)
    n_real_taps = sum(len(p) for p in tap_plan)  # == KH*KW

    # ---- glue: pack input planes [re|im] into NHWC, single pad pass ----
    x_re = jnp.real(x).astype(jnp.float32)
    x_im = jnp.imag(x).astype(jnp.float32)
    x_cat = jnp.concatenate([x_re, x_im], axis=1)            # (N, 2*C_in, H, W)
    x_cat = jnp.transpose(x_cat, (0, 2, 3, 1))               # NHWC
    x_cat = jnp.pad(x_cat, ((0, 0), (pad_t, pad_b), (pad_l, pad_r),
                            (0, KP - 2 * C_in)))

    # ---- glue: per-tap real-embedding weight blocks, lane-padded ----
    w_re = jnp.real(weight).astype(jnp.float32)
    w_im = jnp.imag(weight).astype(jnp.float32)
    wr = jnp.transpose(w_re, (2, 3, 0, 1)).reshape(KH * KW, C_in, C_out)
    wi = jnp.transpose(w_im, (2, 3, 0, 1)).reshape(KH * KW, C_in, C_out)
    w_top = jnp.concatenate([wr, -wi], axis=-1)              # -> out_re | out_im
    w_bot = jnp.concatenate([wi, wr], axis=-1)
    w_big = jnp.concatenate([w_top, w_bot], axis=-2)         # (KH*KW, 2C_in, 2C_out)
    w_big = jnp.pad(w_big, ((0, 0), (0, KP - 2 * C_in), (0, CP - 2 * C_out)))

    # ---- glue: effective bias (merlinth two-real-conv semantics) ----
    if bias is not None:
        b_re = jnp.real(bias).astype(jnp.float32)
        b_im = jnp.imag(bias).astype(jnp.float32)
    else:
        b_re = jnp.zeros((C_out,), jnp.float32)
        b_im = jnp.zeros((C_out,), jnp.float32)
    b_pack = jnp.concatenate([b_re + b_im, b_re - b_im], axis=0)
    b_pack = jnp.pad(b_pack, (0, CP - 2 * C_out)).reshape(1, CP)

    M = TQ * Qw
    kern = functools.partial(_polyphase_kernel, tap_plan=tap_plan,
                             TQ=TQ, QW=Qw, KP=KP, CP=CP)

    flops = 2.0 * N * n_tiles * n_real_taps * M * KP * CP
    bytes_accessed = 4 * (N * Hpad * Wpad * KP
                          + KH * KW * KP * CP
                          + N * n_phase * Qh_pad * Qw * CP
                          + CP)

    y = pl.pallas_call(
        kern,
        out_shape=jax.ShapeDtypeStruct((N, n_phase, Qh_pad * Qw, CP), jnp.float32),
        grid_spec=pltpu.PrefetchScalarGridSpec(
            num_scalar_prefetch=0,
            grid=(N, n_tiles),
            in_specs=[
                pl.BlockSpec((1, Hpad, Wpad, KP), lambda n, t: (n, 0, 0, 0)),
                pl.BlockSpec((KH * KW, KP, CP), lambda n, t: (0, 0, 0)),
                pl.BlockSpec((1, CP), lambda n, t: (0, 0)),
            ],
            out_specs=pl.BlockSpec((1, n_phase, M, CP), lambda n, t: (n, 0, t, 0)),
            scratch_shapes=[pltpu.VMEM((M, CP), jnp.float32)],
        ),
        compiler_params=pltpu.CompilerParams(
            dimension_semantics=("parallel", "parallel"),
            vmem_limit_bytes=32 * 1024 * 1024),
        cost_estimate=pl.CostEstimate(flops=int(flops), transcendentals=0,
                                      bytes_accessed=int(bytes_accessed)),
    )(x_cat, w_big, b_pack)

    # ---- glue: drop lane padding FIRST (10x fewer bytes through the
    #      interleave transpose), then interleave phases back into
    #      (H_out, W_out) and split re/im ----
    y = y[..., :2 * C_out]                                    # (N, nph, rows, 2*C_out)
    y = y.reshape(N, sH, sW, Qh_pad, Qw, 2 * C_out)
    y = jnp.transpose(y, (0, 3, 1, 4, 2, 5))
    y = y.reshape(N, Qh_pad * sH, Qw * sW, 2 * C_out)
    y = y[:, :H_out, :W_out, :]
    out = (y[..., :C_out] + 1j * y[..., C_out:]).astype(jnp.complex64)
    return jnp.transpose(out, (0, 3, 1, 2))                   # NHWC -> NCHW


def _ref_complex_conv_transpose2d(x, weight, bias, stride, padding,
                                  output_padding, dilation):
    """Pure-JAX reference with identical PyTorch semantics (for verification)."""
    C_in, C_out, KH, KW = weight.shape

    def convT(xr, wr, br):
        w_t = jnp.flip(wr, axis=(2, 3)).transpose(1, 0, 2, 3)  # OIHW
        pads = [
            (dilation[0] * (KH - 1) - padding[0],
             dilation[0] * (KH - 1) - padding[0] + output_padding[0]),
            (dilation[1] * (KW - 1) - padding[1],
             dilation[1] * (KW - 1) - padding[1] + output_padding[1]),
        ]
        y = lax.conv_general_dilated(
            xr, w_t, window_strides=(1, 1), padding=pads,
            lhs_dilation=stride, rhs_dilation=dilation,
            dimension_numbers=('NCHW', 'OIHW', 'NCHW'))
        if br is not None:
            y = y + br[None, :, None, None]
        return y

    xr, xi = jnp.real(x), jnp.imag(x)
    wr, wi = jnp.real(weight), jnp.imag(weight)
    br, bi = (jnp.real(bias), jnp.imag(bias)) if bias is not None else (None, None)
    rr = convT(xr, wr, br)
    ii = convT(xi, wi, bi)
    ri = convT(xr, wi, bi)
    ir = convT(xi, wr, br)
    return ((rr + ii) + 1j * (ir - ri)).astype(jnp.complex64)


if __name__ == "__main__":
    key = jax.random.PRNGKey(0)
    k1, k2, k3, k4, k5, k6 = jax.random.split(key, 6)

    # Module config: ComplexConvTranspose2d(4, 6, kernel_size=3, stride=2,
    #                                       padding=1, output_padding=1, bias=True)
    N, C_in, C_out, H, W = 2, 4, 6, 16, 16
    KH = KW = 3
    stride = (2, 2)
    padding = (1, 1)
    output_padding = (1, 1)
    dilation = (1, 1)
    groups = 1

    # Deterministic parameter init (same distribution as reset_parameters):
    # kaiming_uniform_(a=sqrt(5)) -> U(-1/sqrt(fan_in), +), fan_in = (C_out//g)*KH*KW.
    fan_in = (C_out // groups) * KH * KW
    bound = 1.0 / math.sqrt(fan_in)
    w_re = jax.random.uniform(k3, (C_in, C_out // groups, KH, KW), jnp.float32, -bound, bound)
    w_im = jax.random.uniform(k4, (C_in, C_out // groups, KH, KW), jnp.float32, -bound, bound)
    weight = (w_re + 1j * w_im).astype(jnp.complex64)
    b_re = jax.random.uniform(k5, (C_out,), jnp.float32, -bound, bound)
    b_im = jax.random.uniform(k6, (C_out,), jnp.float32, -bound, bound)
    bias = (b_re + 1j * b_im).astype(jnp.complex64)

    x = (jax.random.normal(k1, (N, C_in, H, W), jnp.float32)
         + 1j * jax.random.normal(k2, (N, C_in, H, W), jnp.float32)).astype(jnp.complex64)

    out = complex_conv_transpose2d(x, weight, bias, stride, padding,
                                   output_padding, dilation)
    out = jax.block_until_ready(out)

    ref = _ref_complex_conv_transpose2d(x, weight, bias, stride, padding,
                                        output_padding, dilation)
    assert out.shape == ref.shape == (N, C_out, 32, 32), (out.shape, ref.shape)
    err = float(jnp.max(jnp.abs(out - ref)))
    assert jnp.allclose(out, ref, atol=1e-3, rtol=1e-3), err

    print("KERNEL_OK")
</pallas_src>

<mosaic_0001>
module attributes {stable_mosaic.version = 11 : i64} {
  func.func @_polyphase_kernel(%arg0: i32, %arg1: i32, %arg2: memref<1x17x17x8xf32, #tpu.memory_space<vmem>>, %arg3: memref<9x8x128xf32, #tpu.memory_space<vmem>>, %arg4: memref<1x128xf32, #tpu.memory_space<vmem>>, %arg5: memref<1x4x256x128xf32, #tpu.memory_space<vmem>>, %arg6: memref<256x128xf32, #tpu.memory_space<vmem>>) attributes {dimension_semantics = [#tpu.dimension_semantics<parallel>, #tpu.dimension_semantics<parallel>], iteration_bounds = array<i64: 2, 1>, scalar_prefetch = 0 : i64, scratch_operands = 1 : i64, tpu.core_type = #tpu.core_type<tc>, window_params = [{transform_indices = @transform_0, window_bounds = array<i64: 1, 17, 17, 8>}, {pipeline_mode = #tpu.pipeline_mode<synchronous>, transform_indices = @transform_1, window_bounds = array<i64: 9, 8, 128>}, {pipeline_mode = #tpu.pipeline_mode<synchronous>, transform_indices = @transform_2, window_bounds = array<i64: 1, 128>}, {transform_indices = @transform_3, window_bounds = array<i64: 1, 4, 256, 128>}]} {
    %c16_i32 = arith.constant 16 : i32
    %0 = arith.muli %arg1, %c16_i32 : i32
    %c0 = arith.constant 0 : index
    %c0_0 = arith.constant 0 : index
    %1 = vector.load %arg4[%c0, %c0_0] : memref<1x128xf32, #tpu.memory_space<vmem>>, vector<1x128xf32>
    %c0_i32 = arith.constant 0 : i32
    %2 = arith.addi %0, %c0_i32 : i32
    %c0_1 = arith.constant 0 : index
    %3 = arith.index_cast %2 : i32 to index
    %c0_2 = arith.constant 0 : index
    %c0_3 = arith.constant 0 : index
    %4 = vector.load %arg2[%c0_1, %3, %c0_2, %c0_3] : memref<1x17x17x8xf32, #tpu.memory_space<vmem>>, vector<1x16x16x8xf32>
    %5 = vector.shape_cast %4 : vector<1x16x16x8xf32> to vector<16x16x8xf32>
    %6 = vector.shape_cast %5 : vector<16x16x8xf32> to vector<256x8xf32>
    %c4 = arith.constant 4 : index
    %c0_4 = arith.constant 0 : index
    %c0_5 = arith.constant 0 : index
    %7 = vector.load %arg3[%c4, %c0_4, %c0_5] : memref<9x8x128xf32, #tpu.memory_space<vmem>>, vector<1x8x128xf32>
    %8 = vector.shape_cast %7 : vector<1x8x128xf32> to vector<8x128xf32>
    %cst = arith.constant dense<0.000000e+00> : vector<256x128xf32>
    %9 = tpu.matmul %6, %8, %cst {dimension_numbers = #tpu.dot_dimension_numbers<[1], [0], [0], [1], [0, 0, 1, 1], [], []>} : vector<256x8xf32>, vector<8x128xf32>, vector<256x128xf32> -> vector<256x128xf32>
    %10 = vector.broadcast %1 : vector<1x128xf32> to vector<256x128xf32>
    %11 = arith.addf %9, %10 : vector<256x128xf32>
    %c0_6 = arith.constant 0 : index
    %c0_7 = arith.constant 0 : index
    %c0_8 = arith.constant 0 : index
    %c0_9 = arith.constant 0 : index
    %12 = vector.load %arg5[%c0_6, %c0_7, %c0_8, %c0_9] : memref<1x4x256x128xf32, #tpu.memory_space<vmem>>, vector<1x1x256x128xf32>
    %13 = vector.shape_cast %12 : vector<1x1x256x128xf32> to vector<256x128xf32>
    %14 = vector.shape_cast %11 : vector<256x128xf32> to vector<1x1x256x128xf32>
    tpu.vector_store %arg5[%c0_6, %c0_7, %c0_8, %c0_9], %14 {strides = array<i32>} : memref<1x4x256x128xf32, #tpu.memory_space<vmem>>, vector<1x1x256x128xf32>,
    %c0_i32_10 = arith.constant 0 : i32
    %15 = arith.addi %0, %c0_i32_10 : i32
    %c0_11 = arith.constant 0 : index
    %16 = arith.index_cast %15 : i32 to index
    %c1 = arith.constant 1 : index
    %c0_12 = arith.constant 0 : index
    %17 = vector.load %arg2[%c0_11, %16, %c1, %c0_12] : memref<1x17x17x8xf32, #tpu.memory_space<vmem>>, vector<1x16x16x8xf32>
    %18 = vector.shape_cast %17 : vector<1x16x16x8xf32> to vector<16x16x8xf32>
    %19 = vector.shape_cast %18 : vector<16x16x8xf32> to vector<256x8xf32>
    %c3 = arith.constant 3 : index
    %c0_13 = arith.constant 0 : index
    %c0_14 = arith.constant 0 : index
    %20 = vector.load %arg3[%c3, %c0_13, %c0_14] : memref<9x8x128xf32, #tpu.memory_space<vmem>>, vector<1x8x128xf32>
    %21 = vector.shape_cast %20 : vector<1x8x128xf32> to vector<8x128xf32>
    %cst_15 = arith.constant dense<0.000000e+00> : vector<256x128xf32>
    %22 = tpu.matmul %19, %21, %cst_15 {dimension_numbers = #tpu.dot_dimension_numbers<[1], [0], [0], [1], [0, 0, 1, 1], [], []>} : vector<256x8xf32>, vector<8x128xf32>, vector<256x128xf32> -> vector<256x128xf32>
    %23 = vector.broadcast %1 : vector<1x128xf32> to vector<256x128xf32>
    %24 = arith.addf %22, %23 : vector<256x128xf32>
    %c0_16 = arith.constant 0 : index
    %c0_17 = arith.constant 0 : index
    %25 = vector.load %arg6[%c0_16, %c0_17] : memref<256x128xf32, #tpu.memory_space<vmem>>, vector<256x128xf32>
    tpu.vector_store %arg6[%c0_16, %c0_17], %24 {strides = array<i32>} : memref<256x128xf32, #tpu.memory_space<vmem>>, vector<256x128xf32>,
    %c0_i32_18 = arith.constant 0 : i32
    %26 = arith.addi %0, %c0_i32_18 : i32
    %c0_19 = arith.constant 0 : index
    %27 = arith.index_cast %26 : i32 to index
    %c0_20 = arith.constant 0 : index
    %c0_21 = arith.constant 0 : index
    %28 = vector.load %arg2[%c0_19, %27, %c0_20, %c0_21] : memref<1x17x17x8xf32, #tpu.memory_space<vmem>>, vector<1x16x16x8xf32>
    %29 = vector.shape_cast %28 : vector<1x16x16x8xf32> to vector<16x16x8xf32>
    %30 = vector.shape_cast %29 : vector<16x16x8xf32> to vector<256x8xf32>
    %c5 = arith.constant 5 : index
    %c0_22 = arith.constant 0 : index
    %c0_23 = arith.constant 0 : index
    %31 = vector.load %arg3[%c5, %c0_22, %c0_23] : memref<9x8x128xf32, #tpu.memory_space<vmem>>, vector<1x8x128xf32>
    %32 = vector.shape_cast %31 : vector<1x8x128xf32> to vector<8x128xf32>
    %cst_24 = arith.constant dense<0.000000e+00> : vector<256x128xf32>
    %33 = tpu.matmul %30, %32, %cst_24 {dimension_numbers = #tpu.dot_dimension_numbers<[1], [0], [0], [1], [0, 0, 1, 1], [], []>} : vector<256x8xf32>, vector<8x128xf32>, vector<256x128xf32> -> vector<256x128xf32>
    %c0_25 = arith.constant 0 : index
    %c0_26 = arith.constant 0 : index
    %34 = vector.load %arg6[%c0_25, %c0_26] : memref<256x128xf32, #tpu.memory_space<vmem>>, vector<256x128xf32>
    %35 = arith.addf %34, %33 : vector<256x128xf32>
    %c0_27 = arith.constant 0 : index
    %c1_28 = arith.constant 1 : index
    %c0_29 = arith.constant 0 : index
    %c0_30 = arith.constant 0 : index
    %36 = vector.load %arg5[%c0_27, %c1_28, %c0_29, %c0_30] : memref<1x4x256x128xf32, #tpu.memory_space<vmem>>, vector<1x1x256x128xf32>
    %37 = vector.shape_cast %36 : vector<1x1x256x128xf32> to vector<256x128xf32>
    %38 = vector.shape_cast %35 : vector<256x128xf32> to vector<1x1x256x128xf32>
    tpu.vector_store %arg5[%c0_27, %c1_28, %c0_29, %c0_30], %38 {strides = array<i32>} : memref<1x4x256x128xf32, #tpu.memory_space<vmem>>, vector<1x1x256x128xf32>,
    %c1_i32 = arith.constant 1 : i32
    %39 = arith.addi %0, %c1_i32 : i32
    %c0_31 = arith.constant 0 : index
    %40 = arith.index_cast %39 : i32 to index
    %c0_32 = arith.constant 0 : index
    %c0_33 = arith.constant 0 : index
    %41 = vector.load %arg2[%c0_31, %40, %c0_32, %c0_33] : memref<1x17x17x8xf32, #tpu.memory_space<vmem>>, vector<1x16x16x8xf32>
    %42 = vector.shape_cast %41 : vector<1x16x16x8xf32> to vector<16x16x8xf32>
    %43 = vector.shape_cast %42 : vector<16x16x8xf32> to vector<256x8xf32>
    %c1_34 = arith.constant 1 : index
    %c0_35 = arith.constant 0 : index
    %c0_36 = arith.constant 0 : index
    %44 = vector.load %arg3[%c1_34, %c0_35, %c0_36] : memref<9x8x128xf32, #tpu.memory_space<vmem>>, vector<1x8x128xf32>
    %45 = vector.shape_cast %44 : vector<1x8x128xf32> to vector<8x128xf32>
    %cst_37 = arith.constant dense<0.000000e+00> : vector<256x128xf32>
    %46 = tpu.matmul %43, %45, %cst_37 {dimension_numbers = #tpu.dot_dimension_numbers<[1], [0], [0], [1], [0, 0, 1, 1], [], []>} : vector<256x8xf32>, vector<8x128xf32>, vector<256x128xf32> -> vector<256x128xf32>
    %47 = vector.broadcast %1 : vector<1x128xf32> to vector<256x128xf32>
    %48 = arith.addf %46, %47 : vector<256x128xf32>
    %c0_38 = arith.constant 0 : index
    %c0_39 = arith.constant 0 : index
    %49 = vector.load %arg6[%c0_38, %c0_39] : memref<256x128xf32, #tpu.memory_space<vmem>>, vector<256x128xf32>
    tpu.vector_store %arg6[%c0_38, %c0_39], %48 {strides = array<i32>} : memref<256x128xf32, #tpu.memory_space<vmem>>, vector<256x128xf32>,
    %c0_i32_40 = arith.constant 0 : i32
    %50 = arith.addi %0, %c0_i32_40 : i32
    %c0_41 = arith.constant 0 : index
    %51 = arith.index_cast %50 : i32 to index
    %c0_42 = arith.constant 0 : index
    %c0_43 = arith.constant 0 : index
    %52 = vector.load %arg2[%c0_41, %51, %c0_42, %c0_43] : memref<1x17x17x8xf32, #tpu.memory_space<vmem>>, vector<1x16x16x8xf32>
    %53 = vector.shape_cast %52 : vector<1x16x16x8xf32> to vector<16x16x8xf32>
    %54 = vector.shape_cast %53 : vector<16x16x8xf32> to vector<256x8xf32>
    %c7 = arith.constant 7 : index
    %c0_44 = arith.constant 0 : index
    %c0_45 = arith.constant 0 : index
    %55 = vector.load %arg3[%c7, %c0_44, %c0_45] : memref<9x8x128xf32, #tpu.memory_space<vmem>>, vector<1x8x128xf32>
    %56 = vector.shape_cast %55 : vector<1x8x128xf32> to vector<8x128xf32>
    %cst_46 = arith.constant dense<0.000000e+00> : vector<256x128xf32>
    %57 = tpu.matmul %54, %56, %cst_46 {dimension_numbers = #tpu.dot_dimension_numbers<[1], [0], [0], [1], [0, 0, 1, 1], [], []>} : vector<256x8xf32>, vector<8x128xf32>, vector<256x128xf32> -> vector<256x128xf32>
    %c0_47 = arith.constant 0 : index
    %c0_48 = arith.constant 0 : index
    %58 = vector.load %arg6[%c0_47, %c0_48] : memref<256x128xf32, #tpu.memory_space<vmem>>, vector<256x128xf32>
    %59 = arith.addf %58, %57 : vector<256x128xf32>
    %c0_49 = arith.constant 0 : index
    %c2 = arith.constant 2 : index
    %c0_50 = arith.constant 0 : index
    %c0_51 = arith.constant 0 : index
    %60 = vector.load %arg5[%c0_49, %c2, %c0_50, %c0_51] : memref<1x4x256x128xf32, #tpu.memory_space<vmem>>, vector<1x1x256x128xf32>
    %61 = vector.shape_cast %60 : vector<1x1x256x128xf32> to vector<256x128xf32>
    %62 = vector.shape_cast %59 : vector<256x128xf32> to vector<1x1x256x128xf32>
    tpu.vector_store %arg5[%c0_49, %c2, %c0_50, %c0_51], %62 {strides = array<i32>} : memref<1x4x256x128xf32, #tpu.memory_space<vmem>>, vector<1x1x256x128xf32>,
    %c1_i32_52 = arith.constant 1 : i32
    %63 = arith.addi %0, %c1_i32_52 : i32
    %c0_53 = arith.constant 0 : index
    %64 = arith.index_cast %63 : i32 to index
    %c1_54 = arith.constant 1 : index
    %c0_55 = arith.constant 0 : index
    %65 = vector.load %arg2[%c0_53, %64, %c1_54, %c0_55] : memref<1x17x17x8xf32, #tpu.memory_space<vmem>>, vector<1x16x16x8xf32>
    %66 = vector.shape_cast %65 : vector<1x16x16x8xf32> to vector<16x16x8xf32>
    %67 = vector.shape_cast %66 : vector<16x16x8xf32> to vector<256x8xf32>
    %c0_56 = arith.constant 0 : index
    %c0_57 = arith.constant 0 : index
    %c0_58 = arith.constant 0 : index
    %68 = vector.load %arg3[%c0_56, %c0_57, %c0_58] : memref<9x8x128xf32, #tpu.memory_space<vmem>>, vector<1x8x128xf32>
    %69 = vector.shape_cast %68 : vector<1x8x128xf32> to vector<8x128xf32>
    %cst_59 = arith.constant dense<0.000000e+00> : vector<256x128xf32>
    %70 = tpu.matmul %67, %69, %cst_59 {dimension_numbers = #tpu.dot_dimension_numbers<[1], [0], [0], [1], [0, 0, 1, 1], [], []>} : vector<256x8xf32>, vector<8x128xf32>, vector<256x128xf32> -> vector<256x128xf32>
    %71 = vector.broadcast %1 : vector<1x128xf32> to vector<256x128xf32>
    %72 = arith.addf %70, %71 : vector<256x128xf32>
    %c0_60 = arith.constant 0 : index
    %c0_61 = arith.constant 0 : index
    %73 = vector.load %arg6[%c0_60, %c0_61] : memref<256x128xf32, #tpu.memory_space<vmem>>, vector<256x128xf32>
    tpu.vector_store %arg6[%c0_60, %c0_61], %72 {strides = array<i32>} : memref<256x128xf32, #tpu.memory_space<vmem>>, vector<256x128xf32>,
    %c1_i32_62 = arith.constant 1 : i32
    %74 = arith.addi %0, %c1_i32_62 : i32
    %c0_63 = arith.constant 0 : index
    %75 = arith.index_cast %74 : i32 to index
    %c0_64 = arith.constant 0 : index
    %c0_65 = arith.constant 0 : index
    %76 = vector.load %arg2[%c0_63, %75, %c0_64, %c0_65] : memref<1x17x17x8xf32, #tpu.memory_space<vmem>>, vector<1x16x16x8xf32>
    %77 = vector.shape_cast %76 : vector<1x16x16x8xf32> to vector<16x16x8xf32>
    %78 = vector.shape_cast %77 : vector<16x16x8xf32> to vector<256x8xf32>
    %c2_66 = arith.constant 2 : index
    %c0_67 = arith.constant 0 : index
    %c0_68 = arith.constant 0 : index
    %79 = vector.load %arg3[%c2_66, %c0_67, %c0_68] : memref<9x8x128xf32, #tpu.memory_space<vmem>>, vector<1x8x128xf32>
    %80 = vector.shape_cast %79 : vector<1x8x128xf32> to vector<8x128xf32>
    %cst_69 = arith.constant dense<0.000000e+00> : vector<256x128xf32>
    %81 = tpu.matmul %78, %80, %cst_69 {dimension_numbers = #tpu.dot_dimension_numbers<[1], [0], [0], [1], [0, 0, 1, 1], [], []>} : vector<256x8xf32>, vector<8x128xf32>, vector<256x128xf32> -> vector<256x128xf32>
    %c0_70 = arith.constant 0 : index
    %c0_71 = arith.constant 0 : index
    %82 = vector.load %arg6[%c0_70, %c0_71] : memref<256x128xf32, #tpu.memory_space<vmem>>, vector<256x128xf32>
    %83 = arith.addf %82, %81 : vector<256x128xf32>
    %c0_72 = arith.constant 0 : index
    %c0_73 = arith.constant 0 : index
    %84 = vector.load %arg6[%c0_72, %c0_73] : memref<256x128xf32, #tpu.memory_space<vmem>>, vector<256x128xf32>
    tpu.vector_store %arg6[%c0_72, %c0_73], %83 {strides = array<i32>} : memref<256x128xf32, #tpu.memory_space<vmem>>, vector<256x128xf32>,
    %c0_i32_74 = arith.constant 0 : i32
    %85 = arith.addi %0, %c0_i32_74 : i32
    %c0_75 = arith.constant 0 : index
    %86 = arith.index_cast %85 : i32 to index
    %c1_76 = arith.constant 1 : index
    %c0_77 = arith.constant 0 : index
    %87 = vector.load %arg2[%c0_75, %86, %c1_76, %c0_77] : memref<1x17x17x8xf32, #tpu.memory_space<vmem>>, vector<1x16x16x8xf32>
    %88 = vector.shape_cast %87 : vector<1x16x16x8xf32> to vector<16x16x8xf32>
    %89 = vector.shape_cast %88 : vector<16x16x8xf32> to vector<256x8xf32>
    %c6 = arith.constant 6 : index
    %c0_78 = arith.constant 0 : index
    %c0_79 = arith.constant 0 : index
    %90 = vector.load %arg3[%c6, %c0_78, %c0_79] : memref<9x8x128xf32, #tpu.memory_space<vmem>>, vector<1x8x128xf32>
    %91 = vector.shape_cast %90 : vector<1x8x128xf32> to vector<8x128xf32>
    %cst_80 = arith.constant dense<0.000000e+00> : vector<256x128xf32>
    %92 = tpu.matmul %89, %91, %cst_80 {dimension_numbers = #tpu.dot_dimension_numbers<[1], [0], [0], [1], [0, 0, 1, 1], [], []>} : vector<256x8xf32>, vector<8x128xf32>, vector<256x128xf32> -> vector<256x128xf32>
    %c0_81 = arith.constant 0 : index
    %c0_82 = arith.constant 0 : index
    %93 = vector.load %arg6[%c0_81, %c0_82] : memref<256x128xf32, #tpu.memory_space<vmem>>, vector<256x128xf32>
    %94 = arith.addf %93, %92 : vector<256x128xf32>
    %c0_83 = arith.constant 0 : index
    %c0_84 = arith.constant 0 : index
    %95 = vector.load %arg6[%c0_83, %c0_84] : memref<256x128xf32, #tpu.memory_space<vmem>>, vector<256x128xf32>
    tpu.vector_store %arg6[%c0_83, %c0_84], %94 {strides = array<i32>} : memref<256x128xf32, #tpu.memory_space<vmem>>, vector<256x128xf32>,
    %c0_i32_85 = arith.constant 0 : i32
    %96 = arith.addi %0, %c0_i32_85 : i32
    %c0_86 = arith.constant 0 : index
    %97 = arith.index_cast %96 : i32 to index
    %c0_87 = arith.constant 0 : index
    %c0_88 = arith.constant 0 : index
    %98 = vector.load %arg2[%c0_86, %97, %c0_87, %c0_88] : memref<1x17x17x8xf32, #tpu.memory_space<vmem>>, vector<1x16x16x8xf32>
    %99 = vector.shape_cast %98 : vector<1x16x16x8xf32> to vector<16x16x8xf32>
    %100 = vector.shape_cast %99 : vector<16x16x8xf32> to vector<256x8xf32>
    %c8 = arith.constant 8 : index
    %c0_89 = arith.constant 0 : index
    %c0_90 = arith.constant 0 : index
    %101 = vector.load %arg3[%c8, %c0_89, %c0_90] : memref<9x8x128xf32, #tpu.memory_space<vmem>>, vector<1x8x128xf32>
    %102 = vector.shape_cast %101 : vector<1x8x128xf32> to vector<8x128xf32>
    %cst_91 = arith.constant dense<0.000000e+00> : vector<256x128xf32>
    %103 = tpu.matmul %100, %102, %cst_91 {dimension_numbers = #tpu.dot_dimension_numbers<[1], [0], [0], [1], [0, 0, 1, 1], [], []>} : vector<256x8xf32>, vector<8x128xf32>, vector<256x128xf32> -> vector<256x128xf32>
    %c0_92 = arith.constant 0 : index
    %c0_93 = arith.constant 0 : index
    %104 = vector.load %arg6[%c0_92, %c0_93] : memref<256x128xf32, #tpu.memory_space<vmem>>, vector<256x128xf32>
    %105 = arith.addf %104, %103 : vector<256x128xf32>
    %c0_94 = arith.constant 0 : index
    %c3_95 = arith.constant 3 : index
    %c0_96 = arith.constant 0 : index
    %c0_97 = arith.constant 0 : index
    %106 = vector.load %arg5[%c0_94, %c3_95, %c0_96, %c0_97] : memref<1x4x256x128xf32, #tpu.memory_space<vmem>>, vector<1x1x256x128xf32>
    %107 = vector.shape_cast %106 : vector<1x1x256x128xf32> to vector<256x128xf32>
    %108 = vector.shape_cast %105 : vector<256x128xf32> to vector<1x1x256x128xf32>
    tpu.vector_store %arg5[%c0_94, %c3_95, %c0_96, %c0_97], %108 {strides = array<i32>} : memref<1x4x256x128xf32, #tpu.memory_space<vmem>>, vector<1x1x256x128xf32>,
    return
  }
  func.func @transform_0(%arg0: i32, %arg1: i32) -> (i32, i32, i32, i32) {
    %c0_i32 = arith.constant 0 : i32
    %c0_i32_0 = arith.constant 0 : i32
    %c0_i32_1 = arith.constant 0 : i32
    %c0_i32_2 = arith.constant 0 : i32
    return %arg0, %c0_i32, %c0_i32_0, %c0_i32_1 : i32, i32, i32, i32
  }
  func.func @transform_1(%arg0: i32, %arg1: i32) -> (i32, i32, i32) {
    %c0_i32 = arith.constant 0 : i32
    %c0_i32_0 = arith.constant 0 : i32
    %c0_i32_1 = arith.constant 0 : i32
    %c0_i32_2 = arith.constant 0 : i32
    return %c0_i32, %c0_i32_0, %c0_i32_1 : i32, i32, i32
  }
  func.func @transform_2(%arg0: i32, %arg1: i32) -> (i32, i32) {
    %c0_i32 = arith.constant 0 : i32
    %c0_i32_0 = arith.constant 0 : i32
    %c0_i32_1 = arith.constant 0 : i32
    return %c0_i32, %c0_i32_0 : i32, i32
  }
  func.func @transform_3(%arg0: i32, %arg1: i32) -> (i32, i32, i32, i32) {
    %c0_i32 = arith.constant 0 : i32
    %c0_i32_0 = arith.constant 0 : i32
    %c0_i32_1 = arith.constant 0 : i32
    return %arg0, %c0_i32, %arg1, %c0_i32_0 : i32, i32, i32, i32
  }
}

</mosaic_0001>

<llo_original>
// kernel: tpu_custom_call.1
$region0: #{tpu_custom_call.1}
  #allocation0 [shape = 'u32[]', space=smem, size = 0x4, offset = 0x4, fixed_abs, tag = 'smem constant byte address 0x4 - core index']
  #allocation1 [shape = 'u32[72,128]{1,0:T(1,128)}', space=vmem, size = 0x9000, scoped, tag = 'internal scratch']
  #allocation2 [shape = 'f32[256,128]{1,0:T(8,128)}', space=vmem, size = 0x20000, scoped, tag = 'scratch operand']
  %s0 = inlined_call_operand.vmem [shape: f32[2,17,17,8], index: 0, kind: input, shape index: {}]
  %s1 = inlined_call_operand.vmem [shape: f32[9,8,128], index: 1, kind: input, shape index: {}]
  %s2 = inlined_call_operand.vmem [shape: f32[1,128], index: 2, kind: input, shape index: {}]
  %s3 = inlined_call_operand.hbm [shape: f32[2,4,256,128], index: 3, kind: output, shape index: {}]
  %s4 = sld [smem:[#allocation0]]
  $region45: #{tpu_custom_call.1} parent=0
    _
  %s6 = ssub.s32 1, %s4
  %s7 = scalar_select 0, %s6, %s4
  $region1: #{tpu_custom_call.1} parent=0
    #allocation3 [shape = 'u8[1048576]{0}', space=vmem, size = 0x100000, scoped, tag = 'output window, operand 0']
    #allocation4 [shape = 's32[2]{0}', space=sflag, size = 0x8, scoped, tag = 'scoped memory for tpu_custom_call.1']
    %8 = vsyncpa [#allocation4], 0
    %s9 = scalar_lea.sflag [#allocation4], 1
    %10 = vsyncpa %s9, 0
    loop: start=0, step=1, limit=4
    $region2: #{tpu_custom_call.1} parent=1 // loop_pre_header
      _
    $region3: #{tpu_custom_call.1} parent=1 // loop_header
      %s12 = sphi 0, %s16
      %p13 = scmp.ge.s32.totalorder %s12, 4
      %s19 = sphi 0, %s31
      %s20 = sphi 0, %s27
      %s21 = sphi 0, %s19
      %s22 = sphi 0, %s20
      %s23 = sphi 0, %s21
      %s24 = sphi 0, %s22
      %s34 = sphi 0, %s36
      %s37 = sphi 0, %s34
      %s38 = sphi 0, %s37
      %s54 = sphi 0, %s38
      %s58 = sphi 0, %s58
      %s60 = sphi 0, %s58
      %s61 = sphi 0, %s60
      %s75 = sphi 0, %s61
      %s79 = sphi 0, %s79
      %s81 = sphi 0, %s79
      %s82 = sphi 0, %s81
      %s96 = sphi 0, %s82
      %s104 = sphi 0, %s106
      %s107 = sphi 0, %s104
      %s108 = sphi 0, %s107
      %s124 = sphi 0, %s108
    $region4: #{tpu_custom_call.1} parent=1 // loop_header_branch
      %15 = sbr.rel (%p13) target = $region8
    $region5: #{tpu_custom_call.1} parent=1 // loop_body
      %s17 = ssub.s32 %s12, 1
      %s18 = ssub.s32 %s12, 2
      %s25 = sadd.s32 1, %s20
      %p26 = scmp.ge.s32.totalorder %s25, 1
      %s27 = scalar_select %p26, 0, %s25
      %s28 = sadd.s32 1, %s19
      %s29 = scalar_select %p26, %s28, %s19
      %p30 = scmp.ge.s32.totalorder %s29, 2
      %s31 = scalar_select %p30, 0, %s29
      %s32 = ssub.s32 %s19, %s31
      %p33 = scmp.eq.s32.totalorder %s32, 0
      %s35 = sadd.s32 %s34, 1
      %s36 = scalar_select %p33, %s34, %s35
      %p39 = pneg %p33
      %p40 = scmp.eq.s32.totalorder %s12, 1
      %p41 = por %p39, %p40
      %p42 = scmp.ne.s32.totalorder %s34, %s37
      %p43 = scmp.eq.s32.totalorder %s12, 0
      %p44 = por %p42, %p43
      %p45 = scmp.ne.s32.totalorder %s34, %s37
      %p46 = scmp.eq.s32.totalorder %s17, 1
      %p47 = por %p45, %p46
      %p48 = scmp.ne.s32.totalorder %s37, %s38
      %p49 = scmp.eq.s32.totalorder %s17, 0
      %p50 = por %p48, %p49
      %p51 = scmp.ne.s32.totalorder %s37, %s38
      %p52 = scmp.eq.s32.totalorder %s18, 1
      %p53 = por %p51, %p52
      %p55 = scmp.ne.s32.totalorder %s38, %s54
      %p56 = scmp.eq.s32.totalorder %s18, 0
      %p57 = por %p55, %p56
      %s59 = sadd.s32 %s58, 1
      %p62 = scmp.eq.s32.totalorder %s12, 1
      %p63 = scmp.ne.s32.totalorder %s58, %s60
      %p64 = scmp.eq.s32.totalorder %s12, 0
      %p65 = por %p63, %p64
      %p66 = scmp.ne.s32.totalorder %s58, %s60
      %p67 = scmp.eq.s32.totalorder %s17, 1
      %p68 = por %p66, %p67
      %p69 = scmp.ne.s32.totalorder %s60, %s61
      %p70 = scmp.eq.s32.totalorder %s17, 0
      %p71 = por %p69, %p70
      %p72 = scmp.ne.s32.totalorder %s60, %s61
      %p73 = scmp.eq.s32.totalorder %s18, 1
      %p74 = por %p72, %p73
      %p76 = scmp.ne.s32.totalorder %s61, %s75
      %p77 = scmp.eq.s32.totalorder %s18, 0
      %p78 = por %p76, %p77
      %s80 = sadd.s32 %s79, 1
      %p83 = scmp.eq.s32.totalorder %s12, 1
      %p84 = scmp.ne.s32.totalorder %s79, %s81
      %p85 = scmp.eq.s32.totalorder %s12, 0
      %p86 = por %p84, %p85
      %p87 = scmp.ne.s32.totalorder %s79, %s81
      %p88 = scmp.eq.s32.totalorder %s17, 1
      %p89 = por %p87, %p88
      %p90 = scmp.ne.s32.totalorder %s81, %s82
      %p91 = scmp.eq.s32.totalorder %s17, 0
      %p92 = por %p90, %p91
      %p93 = scmp.ne.s32.totalorder %s81, %s82
      %p94 = scmp.eq.s32.totalorder %s18, 1
      %p95 = por %p93, %p94
      %p97 = scmp.ne.s32.totalorder %s82, %s96
      %p98 = scmp.eq.s32.totalorder %s18, 0
      %p99 = por %p97, %p98
      %s100 = ssub.s32 %s19, %s31
      %s101 = ssub.s32 %s20, %s27
      %s102 = sor.u32 %s100, %s101
      %p103 = scmp.eq.s32.totalorder %s102, 0
      %s105 = sadd.s32 %s104, 1
      %s106 = scalar_select %p103, %s104, %s105
      %p109 = pneg %p103
      %p110 = scmp.eq.s32.totalorder %s12, 1
      %p111 = por %p109, %p110
      %p112 = scmp.ne.s32.totalorder %s104, %s107
      %p113 = scmp.eq.s32.totalorder %s12, 0
      %p114 = por %p112, %p113
      %p115 = scmp.ne.s32.totalorder %s104, %s107
      %p116 = scmp.eq.s32.totalorder %s17, 1
      %p117 = por %p115, %p116
      %p118 = scmp.ne.s32.totalorder %s107, %s108
      %p119 = scmp.eq.s32.totalorder %s17, 0
      %p120 = por %p118, %p119
      %p121 = scmp.ne.s32.totalorder %s107, %s108
      %p122 = scmp.eq.s32.totalorder %s18, 1
      %p123 = por %p121, %p122
      %p125 = scmp.ne.s32.totalorder %s108, %s124
      %p126 = scmp.eq.s32.totalorder %s18, 0
      %p127 = por %p125, %p126
      %p128 = scmp.le.s32.totalorder 1, %s12
      %p129 = scmp.lt.s32.totalorder %s12, 3
      %p130 = pnand %p128, %p129
      %p131 = pneg %p130
      // Predicated region
      $region9: #{tpu_custom_call.1} parent=5 // pred_check
        _
      $region10: #{tpu_custom_call.1} parent=5 // pred_check_branch
        %133 = sbr.rel (%p130) target = $region12
      $region11: #{tpu_custom_call.1} parent=5 // pred_region
        %s134 = ssub.s32 %s12, 1
        // Predicated region
        $region13: #{tpu_custom_call.1} parent=11 // pred_check
          %p135 = pneg %p71
        $region14: #{tpu_custom_call.1} parent=11 // pred_check_branch
          %137 = sbr.rel (%p135) target = $region16
        $region15: #{tpu_custom_call.1} parent=11 // pred_region
          _
        $region16: #{tpu_custom_call.1} parent=11 // pred_fallthru
          _
        // Predicated region
        $region17: #{tpu_custom_call.1} parent=11 // pred_check
          %p138 = pneg %p92
        $region18: #{tpu_custom_call.1} parent=11 // pred_check_branch
          %140 = sbr.rel (%p138) target = $region20
        $region19: #{tpu_custom_call.1} parent=11 // pred_region
          _
        $region20: #{tpu_custom_call.1} parent=11 // pred_fallthru
          _
      $region12: #{tpu_custom_call.1} parent=5 // pred_fallthru
        _
      %p141 = scmp.lt.s32.totalorder %s12, 2
      // Predicated region
      $region21: #{tpu_custom_call.1} parent=5 // pred_check
        %p142 = pneg %p141
      $region22: #{tpu_custom_call.1} parent=5 // pred_check_branch
        %144 = sbr.rel (%p142) target = $region24
      $region23: #{tpu_custom_call.1} parent=5 // pred_region
        // Predicated region
        $region25: #{tpu_custom_call.1} parent=23 // pred_check
          %p145 = pneg %p44
        $region26: #{tpu_custom_call.1} parent=23 // pred_check_branch
          %147 = sbr.rel (%p145) target = $region28
        $region27: #{tpu_custom_call.1} parent=23 // pred_region
          %p148 = scmp.lt.s32.totalorder %s19, 1
          %s149 = scalar_select %p148, %s19, 1
          %s150 = smul.addr %s149, 51
          %s151 = smul.addr %s150, 8
          %s152 = scalar_lea.vmem %s0, %s151
        $region28: #{tpu_custom_call.1} parent=23 // pred_fallthru
          _
      $region24: #{tpu_custom_call.1} parent=5 // pred_fallthru
        _
      %p153 = scmp.le.s32.totalorder 1, %s12
      %p154 = scmp.lt.s32.totalorder %s12, 3
      %p155 = pnand %p153, %p154
      %p156 = pneg %p155
      // Predicated region
      $region29: #{tpu_custom_call.1} parent=5 // pred_check
        _
      $region30: #{tpu_custom_call.1} parent=5 // pred_check_branch
        %158 = sbr.rel (%p155) target = $region32
      $region31: #{tpu_custom_call.1} parent=5 // pred_region
        %s159 = ssub.s32 %s12, 1
        %p160 = scmp.lt.s32.totalorder %s21, 1
        %s161 = scalar_select %p160, %s21, 1
        %s162 = smul.addr %s161, 51
        %s163 = smul.addr %s162, 8
        %s164 = scalar_lea.vmem %s0, %s163
        %p165 = pneg %p50
        %p166 = pneg %p47
        %p167 = pneg %p71
        %p168 = pneg %p68
        %p169 = pneg %p92
        %p170 = pneg %p89
        %p171 = pneg %p120
        %p172 = pneg %p117
        %s173 = sand.u32 %s107, 1
        %s174 = scalar_lea.sflag [#allocation4], %s173
        %s175 = sand.u32 %s107, 1
        %s176 = smul.addr %s175, 1024
        %s177 = scalar_lea.vmem [#allocation3], %s176
        %p178 = scmp.lt.s32.totalorder %s21, 1
        %s179 = scalar_select %p178, %s21, 1
        %s180 = smul.addr %s179, 51
        %s181 = smul.addr %s180, 8
        %s182 = scalar_lea.vmem %s0, %s181
        %s183 = smul.u32 32, %s22
        %s184 = smul.u32 %s22, 16
        %v185 = vld [vmem:[%s2] sm:$0x1]
        %s186 = smul.u32 %s184, 24
        %s187 = scalar_lea.vmem %s182, %s186
        %v188 = vld [vmem:[%s187] sm:$0xff]
        %v189 = vld [vmem:[%s187 + $0x8] sm:$0xff]
        %v190 = vld [vmem:[%s187 + $0x18] sm:$0xff]
        %v191 = vld [vmem:[%s187 + $0x20] sm:$0xff]
        %v192 = vld [vmem:[%s187 + $0x30] sm:$0xff]
        %v193 = vld [vmem:[%s187 + $0x38] sm:$0xff]
        %v194 = vld [vmem:[%s187 + $0x48] sm:$0xff]
        %v195 = vld [vmem:[%s187 + $0x50] sm:$0xff]
        %v196 = vld [vmem:[%s187 + $0x60] sm:$0xff]
        %v197 = vld [vmem:[%s187 + $0x68] sm:$0xff]
        %v198 = vld [vmem:[%s187 + $0x78] sm:$0xff]
        %v199 = vld [vmem:[%s187 + $0x80] sm:$0xff]
        %v200 = vld [vmem:[%s187 + $0x90] sm:$0xff]
        %v201 = vld [vmem:[%s187 + $0x98] sm:$0xff]
        %v202 = vld [vmem:[%s187 + $0xa8] sm:$0xff]
        %v203 = vld [vmem:[%s187 + $0xb0] sm:$0xff]
        %v204 = vld [vmem:[%s187 + $0xc0] sm:$0xff]
        %v205 = vld [vmem:[%s187 + $0xc8] sm:$0xff]
        %v206 = vld [vmem:[%s187 + $0xd8] sm:$0xff]
        %v207 = vld [vmem:[%s187 + $0xe0] sm:$0xff]
        %v208 = vld [vmem:[%s187 + $0xf0] sm:$0xff]
        %v209 = vld [vmem:[%s187 + $0xf8] sm:$0xff]
        %v210 = vld [vmem:[%s187 + $0x108] sm:$0xff]
        %v211 = vld [vmem:[%s187 + $0x110] sm:$0xff]
        %v212 = vld [vmem:[%s187 + $0x120] sm:$0xff]
        %v213 = vld [vmem:[%s187 + $0x128] sm:$0xff]
        %v214 = vld [vmem:[%s187 + $0x138] sm:$0xff]
        %v215 = vld [vmem:[%s187 + $0x140] sm:$0xff]
        %v216 = vld [vmem:[%s187 + $0x150] sm:$0xff]
        %v217 = vld [vmem:[%s187 + $0x158] sm:$0xff]
        %v218 = vld [vmem:[%s187 + $0x168] sm:$0xff]
        %v219 = vld [vmem:[%s187 + $0x170] sm:$0xff]
        %s220 = scalar_lea.vmem %s1, 32
        %v221 = vld [vmem:[%s220] sm:$0xff]
        %v223 = vperm.slane %v185, 0
        %vm225 = vcmask 64512
        %v227 = vsel %vm225, %v188, 0
        %v230 = vsel %vm225, %v189, 0
        %v233 = vsel %vm225, %v190, 0
        %v236 = vsel %vm225, %v191, 0
        %v239 = vsel %vm225, %v192, 0
        %v242 = vsel %vm225, %v193, 0
        %v245 = vsel %vm225, %v194, 0
        %v248 = vsel %vm225, %v195, 0
        %v251 = vsel %vm225, %v196, 0
        %v254 = vsel %vm225, %v197, 0
        %v257 = vsel %vm225, %v198, 0
        %v260 = vsel %vm225, %v199, 0
        %v263 = vsel %vm225, %v200, 0
        %v266 = vsel %vm225, %v201, 0
        %v269 = vsel %vm225, %v202, 0
        %v272 = vsel %vm225, %v203, 0
        %v275 = vsel %vm225, %v204, 0
        %v278 = vsel %vm225, %v205, 0
        %v281 = vsel %vm225, %v206, 0
        %v284 = vsel %vm225, %v207, 0
        %v287 = vsel %vm225, %v208, 0
        %v290 = vsel %vm225, %v209, 0
        %v293 = vsel %vm225, %v210, 0
        %v296 = vsel %vm225, %v211, 0
        %v299 = vsel %vm225, %v212, 0
        %v302 = vsel %vm225, %v213, 0
        %v305 = vsel %vm225, %v214, 0
        %v308 = vsel %vm225, %v215, 0
        %v311 = vsel %vm225, %v216, 0
        %v314 = vsel %vm225, %v217, 0
        %v317 = vsel %vm225, %v218, 0
        %v320 = vsel %vm225, %v219, 0
        %322 = vmatpush.msra.mxu0 0.0
        %323 = vmatpush.msra.mxu0 0.0
        %324 = vmatpush.msra.mxu0 0.0
        %325 = vmatpush.msra.mxu0 0.0
        %326 = vmatpush.msra.mxu0 0.0
        %327 = vmatpush.msra.mxu0 0.0
        %328 = vmatpush.msra.mxu0 0.0
        %329 = vmatpush.msra.mxu0 0.0
        %330 = vmatpush.msra.mxu0 0.0
        %331 = vmatpush.msra.mxu0 0.0
        %332 = vmatpush.msra.mxu0 0.0
        %333 = vmatpush.msra.mxu0 0.0
        %334 = vmatpush.msra.mxu0 0.0
        %335 = vmatpush.msra.mxu0 0.0
        %336 = vmatpush.msra.mxu0 0.0
        %337 = vmatpush.msra.mxu0 %v221
        %338 = vmatmul.f32.gmra.mxu0 %v227
        %v339 = vpop.f32.mrf.mxu0
        %v340 = vadd.f32 %v223, %v339
        %341 = vmatmul.f32.gmra.mxu0 %v230
        %v342 = vpop.f32.mrf.mxu0
        %v343 = vadd.f32 %v223, %v342
        %344 = vmatmul.f32.gmra.mxu0 %v233
        %v345 = vpop.f32.mrf.mxu0
        %v346 = vadd.f32 %v223, %v345
        %347 = vmatmul.f32.gmra.mxu0 %v236
        %v348 = vpop.f32.mrf.mxu0
        %v349 = vadd.f32 %v223, %v348
        %350 = vmatmul.f32.gmra.mxu0 %v239
        %v351 = vpop.f32.mrf.mxu0
        %v352 = vadd.f32 %v223, %v351
        %353 = vmatmul.f32.gmra.mxu0 %v242
        %v354 = vpop.f32.mrf.mxu0
        %v355 = vadd.f32 %v223, %v354
        %356 = vmatmul.f32.gmra.mxu0 %v245
        %v357 = vpop.f32.mrf.mxu0
        %v358 = vadd.f32 %v223, %v357
        %359 = vmatmul.f32.gmra.mxu0 %v248
        %v360 = vpop.f32.mrf.mxu0
        %v361 = vadd.f32 %v223, %v360
        %362 = vmatmul.f32.gmra.mxu0 %v251
        %v363 = vpop.f32.mrf.mxu0
        %v364 = vadd.f32 %v223, %v363
        %365 = vmatmul.f32.gmra.mxu0 %v254
        %v366 = vpop.f32.mrf.mxu0
        %v367 = vadd.f32 %v223, %v366
        %368 = vmatmul.f32.gmra.mxu0 %v257
        %v369 = vpop.f32.mrf.mxu0
        %v370 = vadd.f32 %v223, %v369
        %371 = vmatmul.f32.gmra.mxu0 %v260
        %v372 = vpop.f32.mrf.mxu0
        %v373 = vadd.f32 %v223, %v372
        %374 = vmatmul.f32.gmra.mxu0 %v263
        %v375 = vpop.f32.mrf.mxu0
        %v376 = vadd.f32 %v223, %v375
        %377 = vmatmul.f32.gmra.mxu0 %v266
        %v378 = vpop.f32.mrf.mxu0
        %v379 = vadd.f32 %v223, %v378
        %380 = vmatmul.f32.gmra.mxu0 %v269
        %v381 = vpop.f32.mrf.mxu0
        %v382 = vadd.f32 %v223, %v381
        %383 = vmatmul.f32.gmra.mxu0 %v272
        %v384 = vpop.f32.mrf.mxu0
        %v385 = vadd.f32 %v223, %v384
        %386 = vmatmul.f32.gmra.mxu0 %v275
        %v387 = vpop.f32.mrf.mxu0
        %v388 = vadd.f32 %v223, %v387
        %389 = vmatmul.f32.gmra.mxu0 %v278
        %v390 = vpop.f32.mrf.mxu0
        %v391 = vadd.f32 %v223, %v390
        %392 = vmatmul.f32.gmra.mxu0 %v281
        %v393 = vpop.f32.mrf.mxu0
        %v394 = vadd.f32 %v223, %v393
        %395 = vmatmul.f32.gmra.mxu0 %v284
        %v396 = vpop.f32.mrf.mxu0
        %v397 = vadd.f32 %v223, %v396
        %398 = vmatmul.f32.gmra.mxu0 %v287
        %v399 = vpop.f32.mrf.mxu0
        %v400 = vadd.f32 %v223, %v399
        %401 = vmatmul.f32.gmra.mxu0 %v290
        %v402 = vpop.f32.mrf.mxu0
        %v403 = vadd.f32 %v223, %v402
        %404 = vmatmul.f32.gmra.mxu0 %v293
        %v405 = vpop.f32.mrf.mxu0
        %v406 = vadd.f32 %v223, %v405
        %407 = vmatmul.f32.gmra.mxu0 %v296
        %v408 = vpop.f32.mrf.mxu0
        %v409 = vadd.f32 %v223, %v408
        %410 = vmatmul.f32.gmra.mxu0 %v299
        %v411 = vpop.f32.mrf.mxu0
        %v412 = vadd.f32 %v223, %v411
        %413 = vmatmul.f32.gmra.mxu0 %v302
        %v414 = vpop.f32.mrf.mxu0
        %v415 = vadd.f32 %v223, %v414
        %416 = vmatmul.f32.gmra.mxu0 %v305
        %v417 = vpop.f32.mrf.mxu0
        %v418 = vadd.f32 %v223, %v417
        %419 = vmatmul.f32.gmra.mxu0 %v308
        %v420 = vpop.f32.mrf.mxu0
        %v421 = vadd.f32 %v223, %v420
        %422 = vmatmul.f32.gmra.mxu0 %v311
        %v423 = vpop.f32.mrf.mxu0
        %v424 = vadd.f32 %v223, %v423
        %425 = vmatmul.f32.gmra.mxu0 %v314
        %v426 = vpop.f32.mrf.mxu0
        %v427 = vadd.f32 %v223, %v426
        %428 = vmatmul.f32.gmra.mxu0 %v317
        %v429 = vpop.f32.mrf.mxu0
        %v430 = vadd.f32 %v223, %v429
        %431 = vmatmul.f32.gmra.mxu0 %v320
        %v432 = vpop.f32.mrf.mxu0
        %v433 = vadd.f32 %v223, %v432
        %434 = vdwg.mxu0
        %435 = vst [vmem:[%s177] sm:$0xff] %v340
        %436 = vst [vmem:[%s177 + $0x8] sm:$0xff] %v343
        %437 = vst [vmem:[%s177 + $0x10] sm:$0xff] %v346
        %438 = vst [vmem:[%s177 + $0x18] sm:$0xff] %v349
        %439 = vst [vmem:[%s177 + $0x20] sm:$0xff] %v352
        %440 = vst [vmem:[%s177 + $0x28] sm:$0xff] %v355
        %441 = vst [vmem:[%s177 + $0x30] sm:$0xff] %v358
        %442 = vst [vmem:[%s177 + $0x38] sm:$0xff] %v361
        %443 = vst [vmem:[%s177 + $0x40] sm:$0xff] %v364
        %444 = vst [vmem:[%s177 + $0x48] sm:$0xff] %v367
        %445 = vst [vmem:[%s177 + $0x50] sm:$0xff] %v370
        %446 = vst [vmem:[%s177 + $0x58] sm:$0xff] %v373
        %447 = vst [vmem:[%s177 + $0x60] sm:$0xff] %v376
        %448 = vst [vmem:[%s177 + $0x68] sm:$0xff] %v379
        %449 = vst [vmem:[%s177 + $0x70] sm:$0xff] %v382
        %450 = vst [vmem:[%s177 + $0x78] sm:$0xff] %v385
        %451 = vst [vmem:[%s177 + $0x80] sm:$0xff] %v388
        %452 = vst [vmem:[%s177 + $0x88] sm:$0xff] %v391
        %453 = vst [vmem:[%s177 + $0x90] sm:$0xff] %v394
        %454 = vst [vmem:[%s177 + $0x98] sm:$0xff] %v397
        %455 = vst [vmem:[%s177 + $0xa0] sm:$0xff] %v400
        %456 = vst [vmem:[%s177 + $0xa8] sm:$0xff] %v403
        %457 = vst [vmem:[%s177 + $0xb0] sm:$0xff] %v406
        %458 = vst [vmem:[%s177 + $0xb8] sm:$0xff] %v409
        %459 = vst [vmem:[%s177 + $0xc0] sm:$0xff] %v412
        %460 = vst [vmem:[%s177 + $0xc8] sm:$0xff] %v415
        %461 = vst [vmem:[%s177 + $0xd0] sm:$0xff] %v418
        %462 = vst [vmem:[%s177 + $0xd8] sm:$0xff] %v421
        %463 = vst [vmem:[%s177 + $0xe0] sm:$0xff] %v424
        %464 = vst [vmem:[%s177 + $0xe8] sm:$0xff] %v427
        %465 = vst [vmem:[%s177 + $0xf0] sm:$0xff] %v430
        %466 = vst [vmem:[%s177 + $0xf8] sm:$0xff] %v433
        %v467 = vld [vmem:[%s187 + $0x1] sm:$0xff]
        %v468 = vld [vmem:[%s187 + $0x9] sm:$0xff]
        %v469 = vld [vmem:[%s187 + $0x19] sm:$0xff]
        %v470 = vld [vmem:[%s187 + $0x21] sm:$0xff]
        %v471 = vld [vmem:[%s187 + $0x31] sm:$0xff]
        %v472 = vld [vmem:[%s187 + $0x39] sm:$0xff]
        %v473 = vld [vmem:[%s187 + $0x49] sm:$0xff]
        %v474 = vld [vmem:[%s187 + $0x51] sm:$0xff]
        %v475 = vld [vmem:[%s187 + $0x61] sm:$0xff]
        %v476 = vld [vmem:[%s187 + $0x69] sm:$0xff]
        %v477 = vld [vmem:[%s187 + $0x79] sm:$0xff]
        %v478 = vld [vmem:[%s187 + $0x81] sm:$0xff]
        %v479 = vld [vmem:[%s187 + $0x91] sm:$0xff]
        %v480 = vld [vmem:[%s187 + $0x99] sm:$0xff]
        %v481 = vld [vmem:[%s187 + $0xa9] sm:$0xff]
        %v482 = vld [vmem:[%s187 + $0xb1] sm:$0xff]
        %v483 = vld [vmem:[%s187 + $0xc1] sm:$0xff]
        %v484 = vld [vmem:[%s187 + $0xc9] sm:$0xff]
        %v485 = vld [vmem:[%s187 + $0xd9] sm:$0xff]
        %v486 = vld [vmem:[%s187 + $0xe1] sm:$0xff]
        %v487 = vld [vmem:[%s187 + $0xf1] sm:$0xff]
        %v488 = vld [vmem:[%s187 + $0xf9] sm:$0xff]
        %v489 = vld [vmem:[%s187 + $0x109] sm:$0xff]
        %v490 = vld [vmem:[%s187 + $0x111] sm:$0xff]
        %v491 = vld [vmem:[%s187 + $0x121] sm:$0xff]
        %v492 = vld [vmem:[%s187 + $0x129] sm:$0xff]
        %v493 = vld [vmem:[%s187 + $0x139] sm:$0xff]
        %v494 = vld [vmem:[%s187 + $0x141] sm:$0xff]
        %v495 = vld [vmem:[%s187 + $0x151] sm:$0xff]
        %v496 = vld [vmem:[%s187 + $0x159] sm:$0xff]
        %v497 = vld [vmem:[%s187 + $0x169] sm:$0xff]
        %v498 = vld [vmem:[%s187 + $0x171] sm:$0xff]
        %s499 = scalar_lea.vmem %s1, 24
        %v500 = vld [vmem:[%s499] sm:$0xff]
        %v502 = vsel %vm225, %v467, 0
        %v505 = vsel %vm225, %v468, 0
        %v508 = vsel %vm225, %v469, 0
        %v511 = vsel %vm225, %v470, 0
        %v514 = vsel %vm225, %v471, 0
        %v517 = vsel %vm225, %v472, 0
        %v520 = vsel %vm225, %v473, 0
        %v523 = vsel %vm225, %v474, 0
        %v526 = vsel %vm225, %v475, 0
        %v529 = vsel %vm225, %v476, 0
        %v532 = vsel %vm225, %v477, 0
        %v535 = vsel %vm225, %v478, 0
        %v538 = vsel %vm225, %v479, 0
        %v541 = vsel %vm225, %v480, 0
        %v544 = vsel %vm225, %v481, 0
        %v547 = vsel %vm225, %v482, 0
        %v550 = vsel %vm225, %v483, 0
        %v553 = vsel %vm225, %v484, 0
        %v556 = vsel %vm225, %v485, 0
        %v559 = vsel %vm225, %v486, 0
        %v562 = vsel %vm225, %v487, 0
        %v565 = vsel %vm225, %v488, 0
        %v568 = vsel %vm225, %v489, 0
        %v571 = vsel %vm225, %v490, 0
        %v574 = vsel %vm225, %v491, 0
        %v577 = vsel %vm225, %v492, 0
        %v580 = vsel %vm225, %v493, 0
        %v583 = vsel %vm225, %v494, 0
        %v586 = vsel %vm225, %v495, 0
        %v589 = vsel %vm225, %v496, 0
        %v592 = vsel %vm225, %v497, 0
        %v595 = vsel %vm225, %v498, 0
        %597 = vmatpush.msra.mxu0 0.0
        %598 = vmatpush.msra.mxu0 0.0
        %599 = vmatpush.msra.mxu0 0.0
        %600 = vmatpush.msra.mxu0 0.0
        %601 = vmatpush.msra.mxu0 0.0
        %602 = vmatpush.msra.mxu0 0.0
        %603 = vmatpush.msra.mxu0 0.0
        %604 = vmatpush.msra.mxu0 0.0
        %605 = vmatpush.msra.mxu0 0.0
        %606 = vmatpush.msra.mxu0 0.0
        %607 = vmatpush.msra.mxu0 0.0
        %608 = vmatpush.msra.mxu0 0.0
        %609 = vmatpush.msra.mxu0 0.0
        %610 = vmatpush.msra.mxu0 0.0
        %611 = vmatpush.msra.mxu0 0.0
        %612 = vmatpush.msra.mxu0 %v500
        %613 = vmatmul.f32.gmra.mxu0 %v502
        %v614 = vpop.f32.mrf.mxu0
        %v615 = vadd.f32 %v223, %v614
        %616 = vmatmul.f32.gmra.mxu0 %v505
        %v617 = vpop.f32.mrf.mxu0
        %v618 = vadd.f32 %v223, %v617
        %619 = vmatmul.f32.gmra.mxu0 %v508
        %v620 = vpop.f32.mrf.mxu0
        %v621 = vadd.f32 %v223, %v620
        %622 = vmatmul.f32.gmra.mxu0 %v511
        %v623 = vpop.f32.mrf.mxu0
        %v624 = vadd.f32 %v223, %v623
        %625 = vmatmul.f32.gmra.mxu0 %v514
        %v626 = vpop.f32.mrf.mxu0
        %v627 = vadd.f32 %v223, %v626
        %628 = vmatmul.f32.gmra.mxu0 %v517
        %v629 = vpop.f32.mrf.mxu0
        %v630 = vadd.f32 %v223, %v629
        %631 = vmatmul.f32.gmra.mxu0 %v520
        %v632 = vpop.f32.mrf.mxu0
        %v633 = vadd.f32 %v223, %v632
        %634 = vmatmul.f32.gmra.mxu0 %v523
        %v635 = vpop.f32.mrf.mxu0
        %v636 = vadd.f32 %v223, %v635
        %637 = vmatmul.f32.gmra.mxu0 %v526
        %v638 = vpop.f32.mrf.mxu0
        %v639 = vadd.f32 %v223, %v638
        %640 = vmatmul.f32.gmra.mxu0 %v529
        %v641 = vpop.f32.mrf.mxu0
        %v642 = vadd.f32 %v223, %v641
        %643 = vmatmul.f32.gmra.mxu0 %v532
        %v644 = vpop.f32.mrf.mxu0
        %v645 = vadd.f32 %v223, %v644
        %646 = vmatmul.f32.gmra.mxu0 %v535
        %v647 = vpop.f32.mrf.mxu0
        %v648 = vadd.f32 %v223, %v647
        %649 = vmatmul.f32.gmra.mxu0 %v538
        %v650 = vpop.f32.mrf.mxu0
        %v651 = vadd.f32 %v223, %v650
        %652 = vmatmul.f32.gmra.mxu0 %v541
        %v653 = vpop.f32.mrf.mxu0
        %v654 = vadd.f32 %v223, %v653
        %655 = vmatmul.f32.gmra.mxu0 %v544
        %v656 = vpop.f32.mrf.mxu0
        %v657 = vadd.f32 %v223, %v656
        %658 = vmatmul.f32.gmra.mxu0 %v547
        %v659 = vpop.f32.mrf.mxu0
        %v660 = vadd.f32 %v223, %v659
        %661 = vmatmul.f32.gmra.mxu0 %v550
        %v662 = vpop.f32.mrf.mxu0
        %v663 = vadd.f32 %v223, %v662
        %664 = vmatmul.f32.gmra.mxu0 %v553
        %v665 = vpop.f32.mrf.mxu0
        %v666 = vadd.f32 %v223, %v665
        %667 = vmatmul.f32.gmra.mxu0 %v556
        %v668 = vpop.f32.mrf.mxu0
        %v669 = vadd.f32 %v223, %v668
        %670 = vmatmul.f32.gmra.mxu0 %v559
        %v671 = vpop.f32.mrf.mxu0
        %v672 = vadd.f32 %v223, %v671
        %673 = vmatmul.f32.gmra.mxu0 %v562
        %v674 = vpop.f32.mrf.mxu0
        %v675 = vadd.f32 %v223, %v674
        %676 = vmatmul.f32.gmra.mxu0 %v565
        %v677 = vpop.f32.mrf.mxu0
        %v678 = vadd.f32 %v223, %v677
        %679 = vmatmul.f32.gmra.mxu0 %v568
        %v680 = vpop.f32.mrf.mxu0
        %v681 = vadd.f32 %v223, %v680
        %682 = vmatmul.f32.gmra.mxu0 %v571
        %v683 = vpop.f32.mrf.mxu0
        %v684 = vadd.f32 %v223, %v683
        %685 = vmatmul.f32.gmra.mxu0 %v574
        %v686 = vpop.f32.mrf.mxu0
        %v687 = vadd.f32 %v223, %v686
        %688 = vmatmul.f32.gmra.mxu0 %v577
        %v689 = vpop.f32.mrf.mxu0
        %v690 = vadd.f32 %v223, %v689
        %691 = vmatmul.f32.gmra.mxu0 %v580
        %v692 = vpop.f32.mrf.mxu0
        %v693 = vadd.f32 %v223, %v692
        %694 = vmatmul.f32.gmra.mxu0 %v583
        %v695 = vpop.f32.mrf.mxu0
        %v696 = vadd.f32 %v223, %v695
        %697 = vmatmul.f32.gmra.mxu0 %v586
        %v698 = vpop.f32.mrf.mxu0
        %v699 = vadd.f32 %v223, %v698
        %700 = vmatmul.f32.gmra.mxu0 %v589
        %v701 = vpop.f32.mrf.mxu0
        %v702 = vadd.f32 %v223, %v701
        %703 = vmatmul.f32.gmra.mxu0 %v592
        %v704 = vpop.f32.mrf.mxu0
        %v705 = vadd.f32 %v223, %v704
        %706 = vmatmul.f32.gmra.mxu0 %v595
        %v707 = vpop.f32.mrf.mxu0
        %v708 = vadd.f32 %v223, %v707
        %709 = vdwg.mxu0
        %710 = vst [vmem:[#allocation2] sm:$0xff] %v615
        %711 = vst [vmem:[#allocation2 + $0x8] sm:$0xff] %v618
        %712 = vst [vmem:[#allocation2 + $0x10] sm:$0xff] %v621
        %713 = vst [vmem:[#allocation2 + $0x18] sm:$0xff] %v624
        %714 = vst [vmem:[#allocation2 + $0x20] sm:$0xff] %v627
        %715 = vst [vmem:[#allocation2 + $0x28] sm:$0xff] %v630
        %716 = vst [vmem:[#allocation2 + $0x30] sm:$0xff] %v633
        %717 = vst [vmem:[#allocation2 + $0x38] sm:$0xff] %v636
        %718 = vst [vmem:[#allocation2 + $0x40] sm:$0xff] %v639
        %719 = vst [vmem:[#allocation2 + $0x48] sm:$0xff] %v642
        %720 = vst [vmem:[#allocation2 + $0x50] sm:$0xff] %v645
        %721 = vst [vmem:[#allocation2 + $0x58] sm:$0xff] %v648
        %722 = vst [vmem:[#allocation2 + $0x60] sm:$0xff] %v651
        %723 = vst [vmem:[#allocation2 + $0x68] sm:$0xff] %v654
        %724 = vst [vmem:[#allocation2 + $0x70] sm:$0xff] %v657
        %725 = vst [vmem:[#allocation2 + $0x78] sm:$0xff] %v660
        %726 = vst [vmem:[#allocation2 + $0x80] sm:$0xff] %v663
        %727 = vst [vmem:[#allocation2 + $0x88] sm:$0xff] %v666
        %728 = vst [vmem:[#allocation2 + $0x90] sm:$0xff] %v669
        %729 = vst [vmem:[#allocation2 + $0x98] sm:$0xff] %v672
        %730 = vst [vmem:[#allocation2 + $0xa0] sm:$0xff] %v675
        %731 = vst [vmem:[#allocation2 + $0xa8] sm:$0xff] %v678
        %732 = vst [vmem:[#allocation2 + $0xb0] sm:$0xff] %v681
        %733 = vst [vmem:[#allocation2 + $0xb8] sm:$0xff] %v684
        %734 = vst [vmem:[#allocation2 + $0xc0] sm:$0xff] %v687
        %735 = vst [vmem:[#allocation2 + $0xc8] sm:$0xff] %v690
        %736 = vst [vmem:[#allocation2 + $0xd0] sm:$0xff] %v693
        %737 = vst [vmem:[#allocation2 + $0xd8] sm:$0xff] %v696
        %738 = vst [vmem:[#allocation2 + $0xe0] sm:$0xff] %v699
        %739 = vst [vmem:[#allocation2 + $0xe8] sm:$0xff] %v702
        %740 = vst [vmem:[#allocation2 + $0xf0] sm:$0xff] %v705
        %741 = vst [vmem:[#allocation2 + $0xf8] sm:$0xff] %v708
        %v742 = vld [vmem:[%s187] sm:$0xff]
        %v743 = vld [vmem:[%s187 + $0x8] sm:$0xff]
        %v744 = vld [vmem:[%s187 + $0x18] sm:$0xff]
        %v745 = vld [vmem:[%s187 + $0x20] sm:$0xff]
        %v746 = vld [vmem:[%s187 + $0x30] sm:$0xff]
        %v747 = vld [vmem:[%s187 + $0x38] sm:$0xff]
        %v748 = vld [vmem:[%s187 + $0x48] sm:$0xff]
        %v749 = vld [vmem:[%s187 + $0x50] sm:$0xff]
        %v750 = vld [vmem:[%s187 + $0x60] sm:$0xff]
        %v751 = vld [vmem:[%s187 + $0x68] sm:$0xff]
        %v752 = vld [vmem:[%s187 + $0x78] sm:$0xff]
        %v753 = vld [vmem:[%s187 + $0x80] sm:$0xff]
        %v754 = vld [vmem:[%s187 + $0x90] sm:$0xff]
        %v755 = vld [vmem:[%s187 + $0x98] sm:$0xff]
        %v756 = vld [vmem:[%s187 + $0xa8] sm:$0xff]
        %v757 = vld [vmem:[%s187 + $0xb0] sm:$0xff]
        %v758 = vld [vmem:[%s187 + $0xc0] sm:$0xff]
        %v759 = vld [vmem:[%s187 + $0xc8] sm:$0xff]
        %v760 = vld [vmem:[%s187 + $0xd8] sm:$0xff]
        %v761 = vld [vmem:[%s187 + $0xe0] sm:$0xff]
        %v762 = vld [vmem:[%s187 + $0xf0] sm:$0xff]
        %v763 = vld [vmem:[%s187 + $0xf8] sm:$0xff]
        %v764 = vld [vmem:[%s187 + $0x108] sm:$0xff]
        %v765 = vld [vmem:[%s187 + $0x110] sm:$0xff]
        %v766 = vld [vmem:[%s187 + $0x120] sm:$0xff]
        %v767 = vld [vmem:[%s187 + $0x128] sm:$0xff]
        %v768 = vld [vmem:[%s187 + $0x138] sm:$0xff]
        %v769 = vld [vmem:[%s187 + $0x140] sm:$0xff]
        %v770 = vld [vmem:[%s187 + $0x150] sm:$0xff]
        %v771 = vld [vmem:[%s187 + $0x158] sm:$0xff]
        %v772 = vld [vmem:[%s187 + $0x168] sm:$0xff]
        %v773 = vld [vmem:[%s187 + $0x170] sm:$0xff]
        %s774 = scalar_lea.vmem %s1, 40
        %v775 = vld [vmem:[%s774] sm:$0xff]
        %v777 = vsel %vm225, %v742, 0
        %v780 = vsel %vm225, %v743, 0
        %v783 = vsel %vm225, %v744, 0
        %v786 = vsel %vm225, %v745, 0
        %v789 = vsel %vm225, %v746, 0
        %v792 = vsel %vm225, %v747, 0
        %v795 = vsel %vm225, %v748, 0
        %v798 = vsel %vm225, %v749, 0
        %v801 = vsel %vm225, %v750, 0
        %v804 = vsel %vm225, %v751, 0
        %v807 = vsel %vm225, %v752, 0
        %v810 = vsel %vm225, %v753, 0
        %v813 = vsel %vm225, %v754, 0
        %v816 = vsel %vm225, %v755, 0
        %v819 = vsel %vm225, %v756, 0
        %v822 = vsel %vm225, %v757, 0
        %v825 = vsel %vm225, %v758, 0
        %v828 = vsel %vm225, %v759, 0
        %v831 = vsel %vm225, %v760, 0
        %v834 = vsel %vm225, %v761, 0
        %v837 = vsel %vm225, %v762, 0
        %v840 = vsel %vm225, %v763, 0
        %v843 = vsel %vm225, %v764, 0
        %v846 = vsel %vm225, %v765, 0
        %v849 = vsel %vm225, %v766, 0
        %v852 = vsel %vm225, %v767, 0
        %v855 = vsel %vm225, %v768, 0
        %v858 = vsel %vm225, %v769, 0
        %v861 = vsel %vm225, %v770, 0
        %v864 = vsel %vm225, %v771, 0
        %v867 = vsel %vm225, %v772, 0
        %v870 = vsel %vm225, %v773, 0
        %872 = vmatpush.msra.mxu0 0.0
        %873 = vmatpush.msra.mxu0 0.0
        %874 = vmatpush.msra.mxu0 0.0
        %875 = vmatpush.msra.mxu0 0.0
        %876 = vmatpush.msra.mxu0 0.0
        %877 = vmatpush.msra.mxu0 0.0
        %878 = vmatpush.msra.mxu0 0.0
        %879 = vmatpush.msra.mxu0 0.0
        %880 = vmatpush.msra.mxu0 0.0
        %881 = vmatpush.msra.mxu0 0.0
        %882 = vmatpush.msra.mxu0 0.0
        %883 = vmatpush.msra.mxu0 0.0
        %884 = vmatpush.msra.mxu0 0.0
        %885 = vmatpush.msra.mxu0 0.0
        %886 = vmatpush.msra.mxu0 0.0
        %887 = vmatpush.msra.mxu0 %v775
        %888 = vmatmul.f32.gmra.mxu0 %v777
        %v889 = vpop.f32.mrf.mxu0
        %v890 = vadd.f32 0.0, %v889
        %891 = vmatmul.f32.gmra.mxu0 %v780
        %v892 = vpop.f32.mrf.mxu0
        %v893 = vadd.f32 0.0, %v892
        %894 = vmatmul.f32.gmra.mxu0 %v783
        %v895 = vpop.f32.mrf.mxu0
        %v896 = vadd.f32 0.0, %v895
        %897 = vmatmul.f32.gmra.mxu0 %v786
        %v898 = vpop.f32.mrf.mxu0
        %v899 = vadd.f32 0.0, %v898
        %900 = vmatmul.f32.gmra.mxu0 %v789
        %v901 = vpop.f32.mrf.mxu0
        %v902 = vadd.f32 0.0, %v901
        %903 = vmatmul.f32.gmra.mxu0 %v792
        %v904 = vpop.f32.mrf.mxu0
        %v905 = vadd.f32 0.0, %v904
        %906 = vmatmul.f32.gmra.mxu0 %v795
        %v907 = vpop.f32.mrf.mxu0
        %v908 = vadd.f32 0.0, %v907
        %909 = vmatmul.f32.gmra.mxu0 %v798
        %v910 = vpop.f32.mrf.mxu0
        %v911 = vadd.f32 0.0, %v910
        %912 = vmatmul.f32.gmra.mxu0 %v801
        %v913 = vpop.f32.mrf.mxu0
        %v914 = vadd.f32 0.0, %v913
        %915 = vmatmul.f32.gmra.mxu0 %v804
        %v916 = vpop.f32.mrf.mxu0
        %v917 = vadd.f32 0.0, %v916
        %918 = vmatmul.f32.gmra.mxu0 %v807
        %v919 = vpop.f32.mrf.mxu0
        %v920 = vadd.f32 0.0, %v919
        %921 = vmatmul.f32.gmra.mxu0 %v810
        %v922 = vpop.f32.mrf.mxu0
        %v923 = vadd.f32 0.0, %v922
        %924 = vmatmul.f32.gmra.mxu0 %v813
        %v925 = vpop.f32.mrf.mxu0
        %v926 = vadd.f32 0.0, %v925
        %927 = vmatmul.f32.gmra.mxu0 %v816
        %v928 = vpop.f32.mrf.mxu0
        %v929 = vadd.f32 0.0, %v928
        %930 = vmatmul.f32.gmra.mxu0 %v819
        %v931 = vpop.f32.mrf.mxu0
        %v932 = vadd.f32 0.0, %v931
        %933 = vmatmul.f32.gmra.mxu0 %v822
        %v934 = vpop.f32.mrf.mxu0
        %v935 = vadd.f32 0.0, %v934
        %936 = vmatmul.f32.gmra.mxu0 %v825
        %v937 = vpop.f32.mrf.mxu0
        %v938 = vadd.f32 0.0, %v937
        %939 = vmatmul.f32.gmra.mxu0 %v828
        %v940 = vpop.f32.mrf.mxu0
        %v941 = vadd.f32 0.0, %v940
        %942 = vmatmul.f32.gmra.mxu0 %v831
        %v943 = vpop.f32.mrf.mxu0
        %v944 = vadd.f32 0.0, %v943
        %945 = vmatmul.f32.gmra.mxu0 %v834
        %v946 = vpop.f32.mrf.mxu0
        %v947 = vadd.f32 0.0, %v946
        %948 = vmatmul.f32.gmra.mxu0 %v837
        %v949 = vpop.f32.mrf.mxu0
        %v950 = vadd.f32 0.0, %v949
        %951 = vmatmul.f32.gmra.mxu0 %v840
        %v952 = vpop.f32.mrf.mxu0
        %v953 = vadd.f32 0.0, %v952
        %954 = vmatmul.f32.gmra.mxu0 %v843
        %v955 = vpop.f32.mrf.mxu0
        %v956 = vadd.f32 0.0, %v955
        %957 = vmatmul.f32.gmra.mxu0 %v846
        %v958 = vpop.f32.mrf.mxu0
        %v959 = vadd.f32 0.0, %v958
        %960 = vmatmul.f32.gmra.mxu0 %v849
        %v961 = vpop.f32.mrf.mxu0
        %v962 = vadd.f32 0.0, %v961
        %963 = vmatmul.f32.gmra.mxu0 %v852
        %v964 = vpop.f32.mrf.mxu0
        %v965 = vadd.f32 0.0, %v964
        %966 = vmatmul.f32.gmra.mxu0 %v855
        %v967 = vpop.f32.mrf.mxu0
        %v968 = vadd.f32 0.0, %v967
        %969 = vmatmul.f32.gmra.mxu0 %v858
        %v970 = vpop.f32.mrf.mxu0
        %v971 = vadd.f32 0.0, %v970
        %972 = vmatmul.f32.gmra.mxu0 %v861
        %v973 = vpop.f32.mrf.mxu0
        %v974 = vadd.f32 0.0, %v973
        %975 = vmatmul.f32.gmra.mxu0 %v864
        %v976 = vpop.f32.mrf.mxu0
        %v977 = vadd.f32 0.0, %v976
        %978 = vmatmul.f32.gmra.mxu0 %v867
        %v979 = vpop.f32.mrf.mxu0
        %v980 = vadd.f32 0.0, %v979
        %981 = vmatmul.f32.gmra.mxu0 %v870
        %v982 = vpop.f32.mrf.mxu0
        %v983 = vadd.f32 0.0, %v982
        %984 = vdwg.mxu0
        %v985 = vld [vmem:[#allocation2] sm:$0xff]
        %v986 = vld [vmem:[#allocation2 + $0x8] sm:$0xff]
        %v987 = vld [vmem:[#allocation2 + $0x10] sm:$0xff]
        %v988 = vld [vmem:[#allocation2 + $0x18] sm:$0xff]
        %v989 = vld [vmem:[#allocation2 + $0x20] sm:$0xff]
        %v990 = vld [vmem:[#allocation2 + $0x28] sm:$0xff]
        %v991 = vld [vmem:[#allocation2 + $0x30] sm:$0xff]
        %v992 = vld [vmem:[#allocation2 + $0x38] sm:$0xff]
        %v993 = vld [vmem:[#allocation2 + $0x40] sm:$0xff]
        %v994 = vld [vmem:[#allocation2 + $0x48] sm:$0xff]
        %v995 = vld [vmem:[#allocation2 + $0x50] sm:$0xff]
        %v996 = vld [vmem:[#allocation2 + $0x58] sm:$0xff]
        %v997 = vld [vmem:[#allocation2 + $0x60] sm:$0xff]
        %v998 = vld [vmem:[#allocation2 + $0x68] sm:$0xff]
        %v999 = vld [vmem:[#allocation2 + $0x70] sm:$0xff]
        %v1000 = vld [vmem:[#allocation2 + $0x78] sm:$0xff]
        %v1001 = vld [vmem:[#allocation2 + $0x80] sm:$0xff]
        %v1002 = vld [vmem:[#allocation2 + $0x88] sm:$0xff]
        %v1003 = vld [vmem:[#allocation2 + $0x90] sm:$0xff]
        %v1004 = vld [vmem:[#allocation2 + $0x98] sm:$0xff]
        %v1005 = vld [vmem:[#allocation2 + $0xa0] sm:$0xff]
        %v1006 = vld [vmem:[#allocation2 + $0xa8] sm:$0xff]
        %v1007 = vld [vmem:[#allocation2 + $0xb0] sm:$0xff]
        %v1008 = vld [vmem:[#allocation2 + $0xb8] sm:$0xff]
        %v1009 = vld [vmem:[#allocation2 + $0xc0] sm:$0xff]
        %v1010 = vld [vmem:[#allocation2 + $0xc8] sm:$0xff]
        %v1011 = vld [vmem:[#allocation2 + $0xd0] sm:$0xff]
        %v1012 = vld [vmem:[#allocation2 + $0xd8] sm:$0xff]
        %v1013 = vld [vmem:[#allocation2 + $0xe0] sm:$0xff]
        %v1014 = vld [vmem:[#allocation2 + $0xe8] sm:$0xff]
        %v1015 = vld [vmem:[#allocation2 + $0xf0] sm:$0xff]
        %v1016 = vld [vmem:[#allocation2 + $0xf8] sm:$0xff]
        %v1017 = vadd.f32 %v985, %v890
        %v1018 = vadd.f32 %v986, %v893
        %v1019 = vadd.f32 %v987, %v896
        %v1020 = vadd.f32 %v988, %v899
        %v1021 = vadd.f32 %v989, %v902
        %v1022 = vadd.f32 %v990, %v905
        %v1023 = vadd.f32 %v991, %v908
        %v1024 = vadd.f32 %v992, %v911
        %v1025 = vadd.f32 %v993, %v914
        %v1026 = vadd.f32 %v994, %v917
        %v1027 = vadd.f32 %v995, %v920
        %v1028 = vadd.f32 %v996, %v923
        %v1029 = vadd.f32 %v997, %v926
        %v1030 = vadd.f32 %v998, %v929
        %v1031 = vadd.f32 %v999, %v932
        %v1032 = vadd.f32 %v1000, %v935
        %v1033 = vadd.f32 %v1001, %v938
        %v1034 = vadd.f32 %v1002, %v941
        %v1035 = vadd.f32 %v1003, %v944
        %v1036 = vadd.f32 %v1004, %v947
        %v1037 = vadd.f32 %v1005, %v950
        %v1038 = vadd.f32 %v1006, %v953
        %v1039 = vadd.f32 %v1007, %v956
        %v1040 = vadd.f32 %v1008, %v959
        %v1041 = vadd.f32 %v1009, %v962
        %v1042 = vadd.f32 %v1010, %v965
        %v1043 = vadd.f32 %v1011, %v968
        %v1044 = vadd.f32 %v1012, %v971
        %v1045 = vadd.f32 %v1013, %v974
        %v1046 = vadd.f32 %v1014, %v977
        %v1047 = vadd.f32 %v1015, %v980
        %v1048 = vadd.f32 %v1016, %v983
        %s1049 = scalar_lea.vmem %s177, 256 [#allocation3]
        %1050 = vst [vmem:[%s1049] sm:$0xff] %v1017
        %1051 = vst [vmem:[%s1049 + $0x8] sm:$0xff] %v1018
        %1052 = vst [vmem:[%s1049 + $0x10] sm:$0xff] %v1019
        %1053 = vst [vmem:[%s1049 + $0x18] sm:$0xff] %v1020
        %1054 = vst [vmem:[%s1049 + $0x20] sm:$0xff] %v1021
        %1055 = vst [vmem:[%s1049 + $0x28] sm:$0xff] %v1022
        %1056 = vst [vmem:[%s1049 + $0x30] sm:$0xff] %v1023
        %1057 = vst [vmem:[%s1049 + $0x38] sm:$0xff] %v1024
        %1058 = vst [vmem:[%s1049 + $0x40] sm:$0xff] %v1025
        %1059 = vst [vmem:[%s1049 + $0x48] sm:$0xff] %v1026
        %1060 = vst [vmem:[%s1049 + $0x50] sm:$0xff] %v1027
        %1061 = vst [vmem:[%s1049 + $0x58] sm:$0xff] %v1028
        %1062 = vst [vmem:[%s1049 + $0x60] sm:$0xff] %v1029
        %1063 = vst [vmem:[%s1049 + $0x68] sm:$0xff] %v1030
        %1064 = vst [vmem:[%s1049 + $0x70] sm:$0xff] %v1031
        %1065 = vst [vmem:[%s1049 + $0x78] sm:$0xff] %v1032
        %1066 = vst [vmem:[%s1049 + $0x80] sm:$0xff] %v1033
        %1067 = vst [vmem:[%s1049 + $0x88] sm:$0xff] %v1034
        %1068 = vst [vmem:[%s1049 + $0x90] sm:$0xff] %v1035
        %1069 = vst [vmem:[%s1049 + $0x98] sm:$0xff] %v1036
        %1070 = vst [vmem:[%s1049 + $0xa0] sm:$0xff] %v1037
        %1071 = vst [vmem:[%s1049 + $0xa8] sm:$0xff] %v1038
        %1072 = vst [vmem:[%s1049 + $0xb0] sm:$0xff] %v1039
        %1073 = vst [vmem:[%s1049 + $0xb8] sm:$0xff] %v1040
        %1074 = vst [vmem:[%s1049 + $0xc0] sm:$0xff] %v1041
        %1075 = vst [vmem:[%s1049 + $0xc8] sm:$0xff] %v1042
        %1076 = vst [vmem:[%s1049 + $0xd0] sm:$0xff] %v1043
        %1077 = vst [vmem:[%s1049 + $0xd8] sm:$0xff] %v1044
        %1078 = vst [vmem:[%s1049 + $0xe0] sm:$0xff] %v1045
        %1079 = vst [vmem:[%s1049 + $0xe8] sm:$0xff] %v1046
        %1080 = vst [vmem:[%s1049 + $0xf0] sm:$0xff] %v1047
        %1081 = vst [vmem:[%s1049 + $0xf8] sm:$0xff] %v1048
        %s1082 = sadd.s32 %s184, 1
        %s1083 = smul.u32 %s1082, 24
        %s1084 = scalar_lea.vmem %s182, %s1083
        %v1085 = vld [vmem:[%s1084] sm:$0xff]
        %v1086 = vld [vmem:[%s1084 + $0x8] sm:$0xff]
        %v1087 = vld [vmem:[%s1084 + $0x18] sm:$0xff]
        %v1088 = vld [vmem:[%s1084 + $0x20] sm:$0xff]
        %v1089 = vld [vmem:[%s1084 + $0x30] sm:$0xff]
        %v1090 = vld [vmem:[%s1084 + $0x38] sm:$0xff]
        %v1091 = vld [vmem:[%s1084 + $0x48] sm:$0xff]
        %v1092 = vld [vmem:[%s1084 + $0x50] sm:$0xff]
        %v1093 = vld [vmem:[%s1084 + $0x60] sm:$0xff]
        %v1094 = vld [vmem:[%s1084 + $0x68] sm:$0xff]
        %v1095 = vld [vmem:[%s1084 + $0x78] sm:$0xff]
        %v1096 = vld [vmem:[%s1084 + $0x80] sm:$0xff]
        %v1097 = vld [vmem:[%s1084 + $0x90] sm:$0xff]
        %v1098 = vld [vmem:[%s1084 + $0x98] sm:$0xff]
        %v1099 = vld [vmem:[%s1084 + $0xa8] sm:$0xff]
        %v1100 = vld [vmem:[%s1084 + $0xb0] sm:$0xff]
        %v1101 = vld [vmem:[%s1084 + $0xc0] sm:$0xff]
        %v1102 = vld [vmem:[%s1084 + $0xc8] sm:$0xff]
        %v1103 = vld [vmem:[%s1084 + $0xd8] sm:$0xff]
        %v1104 = vld [vmem:[%s1084 + $0xe0] sm:$0xff]
        %v1105 = vld [vmem:[%s1084 + $0xf0] sm:$0xff]
        %v1106 = vld [vmem:[%s1084 + $0xf8] sm:$0xff]
        %v1107 = vld [vmem:[%s1084 + $0x108] sm:$0xff]
        %v1108 = vld [vmem:[%s1084 + $0x110] sm:$0xff]
        %v1109 = vld [vmem:[%s1084 + $0x120] sm:$0xff]
        %v1110 = vld [vmem:[%s1084 + $0x128] sm:$0xff]
        %v1111 = vld [vmem:[%s1084 + $0x138] sm:$0xff]
        %v1112 = vld [vmem:[%s1084 + $0x140] sm:$0xff]
        %v1113 = vld [vmem:[%s1084 + $0x150] sm:$0xff]
        %v1114 = vld [vmem:[%s1084 + $0x158] sm:$0xff]
        %v1115 = vld [vmem:[%s1084 + $0x168] sm:$0xff]
        %v1116 = vld [vmem:[%s1084 + $0x170] sm:$0xff]
        %s1117 = scalar_lea.vmem %s1, 8
        %v1118 = vld [vmem:[%s1117] sm:$0xff]
        %v1120 = vsel %vm225, %v1085, 0
        %v1123 = vsel %vm225, %v1086, 0
        %v1126 = vsel %vm225, %v1087, 0
        %v1129 = vsel %vm225, %v1088, 0
        %v1132 = vsel %vm225, %v1089, 0
        %v1135 = vsel %vm225, %v1090, 0
        %v1138 = vsel %vm225, %v1091, 0
        %v1141 = vsel %vm225, %v1092, 0
        %v1144 = vsel %vm225, %v1093, 0
        %v1147 = vsel %vm225, %v1094, 0
        %v1150 = vsel %vm225, %v1095, 0
        %v1153 = vsel %vm225, %v1096, 0
        %v1156 = vsel %vm225, %v1097, 0
        %v1159 = vsel %vm225, %v1098, 0
        %v1162 = vsel %vm225, %v1099, 0
        %v1165 = vsel %vm225, %v1100, 0
        %v1168 = vsel %vm225, %v1101, 0
        %v1171 = vsel %vm225, %v1102, 0
        %v1174 = vsel %vm225, %v1103, 0
        %v1177 = vsel %vm225, %v1104, 0
        %v1180 = vsel %vm225, %v1105, 0
        %v1183 = vsel %vm225, %v1106, 0
        %v1186 = vsel %vm225, %v1107, 0
        %v1189 = vsel %vm225, %v1108, 0
        %v1192 = vsel %vm225, %v1109, 0
        %v1195 = vsel %vm225, %v1110, 0
        %v1198 = vsel %vm225, %v1111, 0
        %v1201 = vsel %vm225, %v1112, 0
        %v1204 = vsel %vm225, %v1113, 0
        %v1207 = vsel %vm225, %v1114, 0
        %v1210 = vsel %vm225, %v1115, 0
        %v1213 = vsel %vm225, %v1116, 0
        %1215 = vmatpush.msra.mxu0 0.0
        %1216 = vmatpush.msra.mxu0 0.0
        %1217 = vmatpush.msra.mxu0 0.0
        %1218 = vmatpush.msra.mxu0 0.0
        %1219 = vmatpush.msra.mxu0 0.0
        %1220 = vmatpush.msra.mxu0 0.0
        %1221 = vmatpush.msra.mxu0 0.0
        %1222 = vmatpush.msra.mxu0 0.0
        %1223 = vmatpush.msra.mxu0 0.0
        %1224 = vmatpush.msra.mxu0 0.0
        %1225 = vmatpush.msra.mxu0 0.0
        %1226 = vmatpush.msra.mxu0 0.0
        %1227 = vmatpush.msra.mxu0 0.0
        %1228 = vmatpush.msra.mxu0 0.0
        %1229 = vmatpush.msra.mxu0 0.0
        %1230 = vmatpush.msra.mxu0 %v1118
        %1231 = vmatmul.f32.gmra.mxu0 %v1120
        %v1232 = vpop.f32.mrf.mxu0
        %v1233 = vadd.f32 %v223, %v1232
        %1234 = vmatmul.f32.gmra.mxu0 %v1123
        %v1235 = vpop.f32.mrf.mxu0
        %v1236 = vadd.f32 %v223, %v1235
        %1237 = vmatmul.f32.gmra.mxu0 %v1126
        %v1238 = vpop.f32.mrf.mxu0
        %v1239 = vadd.f32 %v223, %v1238
        %1240 = vmatmul.f32.gmra.mxu0 %v1129
        %v1241 = vpop.f32.mrf.mxu0
        %v1242 = vadd.f32 %v223, %v1241
        %1243 = vmatmul.f32.gmra.mxu0 %v1132
        %v1244 = vpop.f32.mrf.mxu0
        %v1245 = vadd.f32 %v223, %v1244
        %1246 = vmatmul.f32.gmra.mxu0 %v1135
        %v1247 = vpop.f32.mrf.mxu0
        %v1248 = vadd.f32 %v223, %v1247
        %1249 = vmatmul.f32.gmra.mxu0 %v1138
        %v1250 = vpop.f32.mrf.mxu0
        %v1251 = vadd.f32 %v223, %v1250
        %1252 = vmatmul.f32.gmra.mxu0 %v1141
        %v1253 = vpop.f32.mrf.mxu0
        %v1254 = vadd.f32 %v223, %v1253
        %1255 = vmatmul.f32.gmra.mxu0 %v1144
        %v1256 = vpop.f32.mrf.mxu0
        %v1257 = vadd.f32 %v223, %v1256
        %1258 = vmatmul.f32.gmra.mxu0 %v1147
        %v1259 = vpop.f32.mrf.mxu0
        %v1260 = vadd.f32 %v223, %v1259
        %1261 = vmatmul.f32.gmra.mxu0 %v1150
        %v1262 = vpop.f32.mrf.mxu0
        %v1263 = vadd.f32 %v223, %v1262
        %1264 = vmatmul.f32.gmra.mxu0 %v1153
        %v1265 = vpop.f32.mrf.mxu0
        %v1266 = vadd.f32 %v223, %v1265
        %1267 = vmatmul.f32.gmra.mxu0 %v1156
        %v1268 = vpop.f32.mrf.mxu0
        %v1269 = vadd.f32 %v223, %v1268
        %1270 = vmatmul.f32.gmra.mxu0 %v1159
        %v1271 = vpop.f32.mrf.mxu0
        %v1272 = vadd.f32 %v223, %v1271
        %1273 = vmatmul.f32.gmra.mxu0 %v1162
        %v1274 = vpop.f32.mrf.mxu0
        %v1275 = vadd.f32 %v223, %v1274
        %1276 = vmatmul.f32.gmra.mxu0 %v1165
        %v1277 = vpop.f32.mrf.mxu0
        %v1278 = vadd.f32 %v223, %v1277
        %1279 = vmatmul.f32.gmra.mxu0 %v1168
        %v1280 = vpop.f32.mrf.mxu0
        %v1281 = vadd.f32 %v223, %v1280
        %1282 = vmatmul.f32.gmra.mxu0 %v1171
        %v1283 = vpop.f32.mrf.mxu0
        %v1284 = vadd.f32 %v223, %v1283
        %1285 = vmatmul.f32.gmra.mxu0 %v1174
        %v1286 = vpop.f32.mrf.mxu0
        %v1287 = vadd.f32 %v223, %v1286
        %1288 = vmatmul.f32.gmra.mxu0 %v1177
        %v1289 = vpop.f32.mrf.mxu0
        %v1290 = vadd.f32 %v223, %v1289
        %1291 = vmatmul.f32.gmra.mxu0 %v1180
        %v1292 = vpop.f32.mrf.mxu0
        %v1293 = vadd.f32 %v223, %v1292
        %1294 = vmatmul.f32.gmra.mxu0 %v1183
        %v1295 = vpop.f32.mrf.mxu0
        %v1296 = vadd.f32 %v223, %v1295
        %1297 = vmatmul.f32.gmra.mxu0 %v1186
        %v1298 = vpop.f32.mrf.mxu0
        %v1299 = vadd.f32 %v223, %v1298
        %1300 = vmatmul.f32.gmra.mxu0 %v1189
        %v1301 = vpop.f32.mrf.mxu0
        %v1302 = vadd.f32 %v223, %v1301
        %1303 = vmatmul.f32.gmra.mxu0 %v1192
        %v1304 = vpop.f32.mrf.mxu0
        %v1305 = vadd.f32 %v223, %v1304
        %1306 = vmatmul.f32.gmra.mxu0 %v1195
        %v1307 = vpop.f32.mrf.mxu0
        %v1308 = vadd.f32 %v223, %v1307
        %1309 = vmatmul.f32.gmra.mxu0 %v1198
        %v1310 = vpop.f32.mrf.mxu0
        %v1311 = vadd.f32 %v223, %v1310
        %1312 = vmatmul.f32.gmra.mxu0 %v1201
        %v1313 = vpop.f32.mrf.mxu0
        %v1314 = vadd.f32 %v223, %v1313
        %1315 = vmatmul.f32.gmra.mxu0 %v1204
        %v1316 = vpop.f32.mrf.mxu0
        %v1317 = vadd.f32 %v223, %v1316
        %1318 = vmatmul.f32.gmra.mxu0 %v1207
        %v1319 = vpop.f32.mrf.mxu0
        %v1320 = vadd.f32 %v223, %v1319
        %1321 = vmatmul.f32.gmra.mxu0 %v1210
        %v1322 = vpop.f32.mrf.mxu0
        %v1323 = vadd.f32 %v223, %v1322
        %1324 = vmatmul.f32.gmra.mxu0 %v1213
        %v1325 = vpop.f32.mrf.mxu0
        %v1326 = vadd.f32 %v223, %v1325
        %1327 = vdwg.mxu0
        %1328 = vst [vmem:[#allocation2] sm:$0xff] %v1233
        %1329 = vst [vmem:[#allocation2 + $0x8] sm:$0xff] %v1236
        %1330 = vst [vmem:[#allocation2 + $0x10] sm:$0xff] %v1239
        %1331 = vst [vmem:[#allocation2 + $0x18] sm:$0xff] %v1242
        %1332 = vst [vmem:[#allocation2 + $0x20] sm:$0xff] %v1245
        %1333 = vst [vmem:[#allocation2 + $0x28] sm:$0xff] %v1248
        %1334 = vst [vmem:[#allocation2 + $0x30] sm:$0xff] %v1251
        %1335 = vst [vmem:[#allocation2 + $0x38] sm:$0xff] %v1254
        %1336 = vst [vmem:[#allocation2 + $0x40] sm:$0xff] %v1257
        %1337 = vst [vmem:[#allocation2 + $0x48] sm:$0xff] %v1260
        %1338 = vst [vmem:[#allocation2 + $0x50] sm:$0xff] %v1263
        %1339 = vst [vmem:[#allocation2 + $0x58] sm:$0xff] %v1266
        %1340 = vst [vmem:[#allocation2 + $0x60] sm:$0xff] %v1269
        %1341 = vst [vmem:[#allocation2 + $0x68] sm:$0xff] %v1272
        %1342 = vst [vmem:[#allocation2 + $0x70] sm:$0xff] %v1275
        %1343 = vst [vmem:[#allocation2 + $0x78] sm:$0xff] %v1278
        %1344 = vst [vmem:[#allocation2 + $0x80] sm:$0xff] %v1281
        %1345 = vst [vmem:[#allocation2 + $0x88] sm:$0xff] %v1284
        %1346 = vst [vmem:[#allocation2 + $0x90] sm:$0xff] %v1287
        %1347 = vst [vmem:[#allocation2 + $0x98] sm:$0xff] %v1290
        %1348 = vst [vmem:[#allocation2 + $0xa0] sm:$0xff] %v1293
        %1349 = vst [vmem:[#allocation2 + $0xa8] sm:$0xff] %v1296
        %1350 = vst [vmem:[#allocation2 + $0xb0] sm:$0xff] %v1299
        %1351 = vst [vmem:[#allocation2 + $0xb8] sm:$0xff] %v1302
        %1352 = vst [vmem:[#allocation2 + $0xc0] sm:$0xff] %v1305
        %1353 = vst [vmem:[#allocation2 + $0xc8] sm:$0xff] %v1308
        %1354 = vst [vmem:[#allocation2 + $0xd0] sm:$0xff] %v1311
        %1355 = vst [vmem:[#allocation2 + $0xd8] sm:$0xff] %v1314
        %1356 = vst [vmem:[#allocation2 + $0xe0] sm:$0xff] %v1317
        %1357 = vst [vmem:[#allocation2 + $0xe8] sm:$0xff] %v1320
        %1358 = vst [vmem:[#allocation2 + $0xf0] sm:$0xff] %v1323
        %1359 = vst [vmem:[#allocation2 + $0xf8] sm:$0xff] %v1326
        %v1360 = vld [vmem:[%s187] sm:$0xff]
        %v1361 = vld [vmem:[%s187 + $0x8] sm:$0xff]
        %v1362 = vld [vmem:[%s187 + $0x18] sm:$0xff]
        %v1363 = vld [vmem:[%s187 + $0x20] sm:$0xff]
        %v1364 = vld [vmem:[%s187 + $0x30] sm:$0xff]
        %v1365 = vld [vmem:[%s187 + $0x38] sm:$0xff]
        %v1366 = vld [vmem:[%s187 + $0x48] sm:$0xff]
        %v1367 = vld [vmem:[%s187 + $0x50] sm:$0xff]
        %v1368 = vld [vmem:[%s187 + $0x60] sm:$0xff]
        %v1369 = vld [vmem:[%s187 + $0x68] sm:$0xff]
        %v1370 = vld [vmem:[%s187 + $0x78] sm:$0xff]
        %v1371 = vld [vmem:[%s187 + $0x80] sm:$0xff]
        %v1372 = vld [vmem:[%s187 + $0x90] sm:$0xff]
        %v1373 = vld [vmem:[%s187 + $0x98] sm:$0xff]
        %v1374 = vld [vmem:[%s187 + $0xa8] sm:$0xff]
        %v1375 = vld [vmem:[%s187 + $0xb0] sm:$0xff]
        %v1376 = vld [vmem:[%s187 + $0xc0] sm:$0xff]
        %v1377 = vld [vmem:[%s187 + $0xc8] sm:$0xff]
        %v1378 = vld [vmem:[%s187 + $0xd8] sm:$0xff]
        %v1379 = vld [vmem:[%s187 + $0xe0] sm:$0xff]
        %v1380 = vld [vmem:[%s187 + $0xf0] sm:$0xff]
        %v1381 = vld [vmem:[%s187 + $0xf8] sm:$0xff]
        %v1382 = vld [vmem:[%s187 + $0x108] sm:$0xff]
        %v1383 = vld [vmem:[%s187 + $0x110] sm:$0xff]
        %v1384 = vld [vmem:[%s187 + $0x120] sm:$0xff]
        %v1385 = vld [vmem:[%s187 + $0x128] sm:$0xff]
        %v1386 = vld [vmem:[%s187 + $0x138] sm:$0xff]
        %v1387 = vld [vmem:[%s187 + $0x140] sm:$0xff]
        %v1388 = vld [vmem:[%s187 + $0x150] sm:$0xff]
        %v1389 = vld [vmem:[%s187 + $0x158] sm:$0xff]
        %v1390 = vld [vmem:[%s187 + $0x168] sm:$0xff]
        %v1391 = vld [vmem:[%s187 + $0x170] sm:$0xff]
        %s1392 = scalar_lea.vmem %s1, 56
        %v1393 = vld [vmem:[%s1392] sm:$0xff]
        %v1395 = vsel %vm225, %v1360, 0
        %v1398 = vsel %vm225, %v1361, 0
        %v1401 = vsel %vm225, %v1362, 0
        %v1404 = vsel %vm225, %v1363, 0
        %v1407 = vsel %vm225, %v1364, 0
        %v1410 = vsel %vm225, %v1365, 0
        %v1413 = vsel %vm225, %v1366, 0
        %v1416 = vsel %vm225, %v1367, 0
        %v1419 = vsel %vm225, %v1368, 0
        %v1422 = vsel %vm225, %v1369, 0
        %v1425 = vsel %vm225, %v1370, 0
        %v1428 = vsel %vm225, %v1371, 0
        %v1431 = vsel %vm225, %v1372, 0
        %v1434 = vsel %vm225, %v1373, 0
        %v1437 = vsel %vm225, %v1374, 0
        %v1440 = vsel %vm225, %v1375, 0
        %v1443 = vsel %vm225, %v1376, 0
        %v1446 = vsel %vm225, %v1377, 0
        %v1449 = vsel %vm225, %v1378, 0
        %v1452 = vsel %vm225, %v1379, 0
        %v1455 = vsel %vm225, %v1380, 0
        %v1458 = vsel %vm225, %v1381, 0
        %v1461 = vsel %vm225, %v1382, 0
        %v1464 = vsel %vm225, %v1383, 0
        %v1467 = vsel %vm225, %v1384, 0
        %v1470 = vsel %vm225, %v1385, 0
        %v1473 = vsel %vm225, %v1386, 0
        %v1476 = vsel %vm225, %v1387, 0
        %v1479 = vsel %vm225, %v1388, 0
        %v1482 = vsel %vm225, %v1389, 0
        %v1485 = vsel %vm225, %v1390, 0
        %v1488 = vsel %vm225, %v1391, 0
        %1490 = vmatpush.msra.mxu0 0.0
        %1491 = vmatpush.msra.mxu0 0.0
        %1492 = vmatpush.msra.mxu0 0.0
        %1493 = vmatpush.msra.mxu0 0.0
        %1494 = vmatpush.msra.mxu0 0.0
        %1495 = vmatpush.msra.mxu0 0.0
        %1496 = vmatpush.msra.mxu0 0.0
        %1497 = vmatpush.msra.mxu0 0.0
        %1498 = vmatpush.msra.mxu0 0.0
        %1499 = vmatpush.msra.mxu0 0.0
        %1500 = vmatpush.msra.mxu0 0.0
        %1501 = vmatpush.msra.mxu0 0.0
        %1502 = vmatpush.msra.mxu0 0.0
        %1503 = vmatpush.msra.mxu0 0.0
        %1504 = vmatpush.msra.mxu0 0.0
        %1505 = vmatpush.msra.mxu0 %v1393
        %1506 = vmatmul.f32.gmra.mxu0 %v1395
        %v1507 = vpop.f32.mrf.mxu0
        %v1508 = vadd.f32 0.0, %v1507
        %1509 = vmatmul.f32.gmra.mxu0 %v1398
        %v1510 = vpop.f32.mrf.mxu0
        %v1511 = vadd.f32 0.0, %v1510
        %1512 = vmatmul.f32.gmra.mxu0 %v1401
        %v1513 = vpop.f32.mrf.mxu0
        %v1514 = vadd.f32 0.0, %v1513
        %1515 = vmatmul.f32.gmra.mxu0 %v1404
        %v1516 = vpop.f32.mrf.mxu0
        %v1517 = vadd.f32 0.0, %v1516
        %1518 = vmatmul.f32.gmra.mxu0 %v1407
        %v1519 = vpop.f32.mrf.mxu0
        %v1520 = vadd.f32 0.0, %v1519
        %1521 = vmatmul.f32.gmra.mxu0 %v1410
        %v1522 = vpop.f32.mrf.mxu0
        %v1523 = vadd.f32 0.0, %v1522
        %1524 = vmatmul.f32.gmra.mxu0 %v1413
        %v1525 = vpop.f32.mrf.mxu0
        %v1526 = vadd.f32 0.0, %v1525
        %1527 = vmatmul.f32.gmra.mxu0 %v1416
        %v1528 = vpop.f32.mrf.mxu0
        %v1529 = vadd.f32 0.0, %v1528
        %1530 = vmatmul.f32.gmra.mxu0 %v1419
        %v1531 = vpop.f32.mrf.mxu0
        %v1532 = vadd.f32 0.0, %v1531
        %1533 = vmatmul.f32.gmra.mxu0 %v1422
        %v1534 = vpop.f32.mrf.mxu0
        %v1535 = vadd.f32 0.0, %v1534
        %1536 = vmatmul.f32.gmra.mxu0 %v1425
        %v1537 = vpop.f32.mrf.mxu0
        %v1538 = vadd.f32 0.0, %v1537
        %1539 = vmatmul.f32.gmra.mxu0 %v1428
        %v1540 = vpop.f32.mrf.mxu0
        %v1541 = vadd.f32 0.0, %v1540
        %1542 = vmatmul.f32.gmra.mxu0 %v1431
        %v1543 = vpop.f32.mrf.mxu0
        %v1544 = vadd.f32 0.0, %v1543
        %1545 = vmatmul.f32.gmra.mxu0 %v1434
        %v1546 = vpop.f32.mrf.mxu0
        %v1547 = vadd.f32 0.0, %v1546
        %1548 = vmatmul.f32.gmra.mxu0 %v1437
        %v1549 = vpop.f32.mrf.mxu0
        %v1550 = vadd.f32 0.0, %v1549
        %1551 = vmatmul.f32.gmra.mxu0 %v1440
        %v1552 = vpop.f32.mrf.mxu0
        %v1553 = vadd.f32 0.0, %v1552
        %1554 = vmatmul.f32.gmra.mxu0 %v1443
        %v1555 = vpop.f32.mrf.mxu0
        %v1556 = vadd.f32 0.0, %v1555
        %1557 = vmatmul.f32.gmra.mxu0 %v1446
        %v1558 = vpop.f32.mrf.mxu0
        %v1559 = vadd.f32 0.0, %v1558
        %1560 = vmatmul.f32.gmra.mxu0 %v1449
        %v1561 = vpop.f32.mrf.mxu0
        %v1562 = vadd.f32 0.0, %v1561
        %1563 = vmatmul.f32.gmra.mxu0 %v1452
        %v1564 = vpop.f32.mrf.mxu0
        %v1565 = vadd.f32 0.0, %v1564
        %1566 = vmatmul.f32.gmra.mxu0 %v1455
        %v1567 = vpop.f32.mrf.mxu0
        %v1568 = vadd.f32 0.0, %v1567
        %1569 = vmatmul.f32.gmra.mxu0 %v1458
        %v1570 = vpop.f32.mrf.mxu0
        %v1571 = vadd.f32 0.0, %v1570
        %1572 = vmatmul.f32.gmra.mxu0 %v1461
        %v1573 = vpop.f32.mrf.mxu0
        %v1574 = vadd.f32 0.0, %v1573
        %1575 = vmatmul.f32.gmra.mxu0 %v1464
        %v1576 = vpop.f32.mrf.mxu0
        %v1577 = vadd.f32 0.0, %v1576
        %1578 = vmatmul.f32.gmra.mxu0 %v1467
        %v1579 = vpop.f32.mrf.mxu0
        %v1580 = vadd.f32 0.0, %v1579
        %1581 = vmatmul.f32.gmra.mxu0 %v1470
        %v1582 = vpop.f32.mrf.mxu0
        %v1583 = vadd.f32 0.0, %v1582
        %1584 = vmatmul.f32.gmra.mxu0 %v1473
        %v1585 = vpop.f32.mrf.mxu0
        %v1586 = vadd.f32 0.0, %v1585
        %1587 = vmatmul.f32.gmra.mxu0 %v1476
        %v1588 = vpop.f32.mrf.mxu0
        %v1589 = vadd.f32 0.0, %v1588
        %1590 = vmatmul.f32.gmra.mxu0 %v1479
        %v1591 = vpop.f32.mrf.mxu0
        %v1592 = vadd.f32 0.0, %v1591
        %1593 = vmatmul.f32.gmra.mxu0 %v1482
        %v1594 = vpop.f32.mrf.mxu0
        %v1595 = vadd.f32 0.0, %v1594
        %1596 = vmatmul.f32.gmra.mxu0 %v1485
        %v1597 = vpop.f32.mrf.mxu0
        %v1598 = vadd.f32 0.0, %v1597
        %1599 = vmatmul.f32.gmra.mxu0 %v1488
        %v1600 = vpop.f32.mrf.mxu0
        %v1601 = vadd.f32 0.0, %v1600
        %1602 = vdwg.mxu0
        %v1603 = vld [vmem:[#allocation2] sm:$0xff]
        %v1604 = vld [vmem:[#allocation2 + $0x8] sm:$0xff]
        %v1605 = vld [vmem:[#allocation2 + $0x10] sm:$0xff]
        %v1606 = vld [vmem:[#allocation2 + $0x18] sm:$0xff]
        %v1607 = vld [vmem:[#allocation2 + $0x20] sm:$0xff]
        %v1608 = vld [vmem:[#allocation2 + $0x28] sm:$0xff]
        %v1609 = vld [vmem:[#allocation2 + $0x30] sm:$0xff]
        %v1610 = vld [vmem:[#allocation2 + $0x38] sm:$0xff]
        %v1611 = vld [vmem:[#allocation2 + $0x40] sm:$0xff]
        %v1612 = vld [vmem:[#allocation2 + $0x48] sm:$0xff]
        %v1613 = vld [vmem:[#allocation2 + $0x50] sm:$0xff]
        %v1614 = vld [vmem:[#allocation2 + $0x58] sm:$0xff]
        %v1615 = vld [vmem:[#allocation2 + $0x60] sm:$0xff]
        %v1616 = vld [vmem:[#allocation2 + $0x68] sm:$0xff]
        %v1617 = vld [vmem:[#allocation2 + $0x70] sm:$0xff]
        %v1618 = vld [vmem:[#allocation2 + $0x78] sm:$0xff]
        %v1619 = vld [vmem:[#allocation2 + $0x80] sm:$0xff]
        %v1620 = vld [vmem:[#allocation2 + $0x88] sm:$0xff]
        %v1621 = vld [vmem:[#allocation2 + $0x90] sm:$0xff]
        %v1622 = vld [vmem:[#allocation2 + $0x98] sm:$0xff]
        %v1623 = vld [vmem:[#allocation2 + $0xa0] sm:$0xff]
        %v1624 = vld [vmem:[#allocation2 + $0xa8] sm:$0xff]
        %v1625 = vld [vmem:[#allocation2 + $0xb0] sm:$0xff]
        %v1626 = vld [vmem:[#allocation2 + $0xb8] sm:$0xff]
        %v1627 = vld [vmem:[#allocation2 + $0xc0] sm:$0xff]
        %v1628 = vld [vmem:[#allocation2 + $0xc8] sm:$0xff]
        %v1629 = vld [vmem:[#allocation2 + $0xd0] sm:$0xff]
        %v1630 = vld [vmem:[#allocation2 + $0xd8] sm:$0xff]
        %v1631 = vld [vmem:[#allocation2 + $0xe0] sm:$0xff]
        %v1632 = vld [vmem:[#allocation2 + $0xe8] sm:$0xff]
        %v1633 = vld [vmem:[#allocation2 + $0xf0] sm:$0xff]
        %v1634 = vld [vmem:[#allocation2 + $0xf8] sm:$0xff]
        %v1635 = vadd.f32 %v1603, %v1508
        %v1636 = vadd.f32 %v1604, %v1511
        %v1637 = vadd.f32 %v1605, %v1514
        %v1638 = vadd.f32 %v1606, %v1517
        %v1639 = vadd.f32 %v1607, %v1520
        %v1640 = vadd.f32 %v1608, %v1523
        %v1641 = vadd.f32 %v1609, %v1526
        %v1642 = vadd.f32 %v1610, %v1529
        %v1643 = vadd.f32 %v1611, %v1532
        %v1644 = vadd.f32 %v1612, %v1535
        %v1645 = vadd.f32 %v1613, %v1538
        %v1646 = vadd.f32 %v1614, %v1541
        %v1647 = vadd.f32 %v1615, %v1544
        %v1648 = vadd.f32 %v1616, %v1547
        %v1649 = vadd.f32 %v1617, %v1550
        %v1650 = vadd.f32 %v1618, %v1553
        %v1651 = vadd.f32 %v1619, %v1556
        %v1652 = vadd.f32 %v1620, %v1559
        %v1653 = vadd.f32 %v1621, %v1562
        %v1654 = vadd.f32 %v1622, %v1565
        %v1655 = vadd.f32 %v1623, %v1568
        %v1656 = vadd.f32 %v1624, %v1571
        %v1657 = vadd.f32 %v1625, %v1574
        %v1658 = vadd.f32 %v1626, %v1577
        %v1659 = vadd.f32 %v1627, %v1580
        %v1660 = vadd.f32 %v1628, %v1583
        %v1661 = vadd.f32 %v1629, %v1586
        %v1662 = vadd.f32 %v1630, %v1589
        %v1663 = vadd.f32 %v1631, %v1592
        %v1664 = vadd.f32 %v1632, %v1595
        %v1665 = vadd.f32 %v1633, %v1598
        %v1666 = vadd.f32 %v1634, %v1601
        %s1667 = scalar_lea.vmem %s177, 512 [#allocation3]
        %1668 = vst [vmem:[%s1667] sm:$0xff] %v1635
        %1669 = vst [vmem:[%s1667 + $0x8] sm:$0xff] %v1636
        %1670 = vst [vmem:[%s1667 + $0x10] sm:$0xff] %v1637
        %1671 = vst [vmem:[%s1667 + $0x18] sm:$0xff] %v1638
        %1672 = vst [vmem:[%s1667 + $0x20] sm:$0xff] %v1639
        %1673 = vst [vmem:[%s1667 + $0x28] sm:$0xff] %v1640
        %1674 = vst [vmem:[%s1667 + $0x30] sm:$0xff] %v1641
        %1675 = vst [vmem:[%s1667 + $0x38] sm:$0xff] %v1642
        %1676 = vst [vmem:[%s1667 + $0x40] sm:$0xff] %v1643
        %1677 = vst [vmem:[%s1667 + $0x48] sm:$0xff] %v1644
        %1678 = vst [vmem:[%s1667 + $0x50] sm:$0xff] %v1645
        %1679 = vst [vmem:[%s1667 + $0x58] sm:$0xff] %v1646
        %1680 = vst [vmem:[%s1667 + $0x60] sm:$0xff] %v1647
        %1681 = vst [vmem:[%s1667 + $0x68] sm:$0xff] %v1648
        %1682 = vst [vmem:[%s1667 + $0x70] sm:$0xff] %v1649
        %1683 = vst [vmem:[%s1667 + $0x78] sm:$0xff] %v1650
        %1684 = vst [vmem:[%s1667 + $0x80] sm:$0xff] %v1651
        %1685 = vst [vmem:[%s1667 + $0x88] sm:$0xff] %v1652
        %1686 = vst [vmem:[%s1667 + $0x90] sm:$0xff] %v1653
        %1687 = vst [vmem:[%s1667 + $0x98] sm:$0xff] %v1654
        %1688 = vst [vmem:[%s1667 + $0xa0] sm:$0xff] %v1655
        %1689 = vst [vmem:[%s1667 + $0xa8] sm:$0xff] %v1656
        %1690 = vst [vmem:[%s1667 + $0xb0] sm:$0xff] %v1657
        %1691 = vst [vmem:[%s1667 + $0xb8] sm:$0xff] %v1658
        %1692 = vst [vmem:[%s1667 + $0xc0] sm:$0xff] %v1659
        %1693 = vst [vmem:[%s1667 + $0xc8] sm:$0xff] %v1660
        %1694 = vst [vmem:[%s1667 + $0xd0] sm:$0xff] %v1661
        %1695 = vst [vmem:[%s1667 + $0xd8] sm:$0xff] %v1662
        %1696 = vst [vmem:[%s1667 + $0xe0] sm:$0xff] %v1663
        %1697 = vst [vmem:[%s1667 + $0xe8] sm:$0xff] %v1664
        %1698 = vst [vmem:[%s1667 + $0xf0] sm:$0xff] %v1665
        %1699 = vst [vmem:[%s1667 + $0xf8] sm:$0xff] %v1666
        %v1700 = vld [vmem:[%s1084 + $0x1] sm:$0xff]
        %v1701 = vld [vmem:[%s1084 + $0x9] sm:$0xff]
        %v1702 = vld [vmem:[%s1084 + $0x19] sm:$0xff]
        %v1703 = vld [vmem:[%s1084 + $0x21] sm:$0xff]
        %v1704 = vld [vmem:[%s1084 + $0x31] sm:$0xff]
        %v1705 = vld [vmem:[%s1084 + $0x39] sm:$0xff]
        %v1706 = vld [vmem:[%s1084 + $0x49] sm:$0xff]
        %v1707 = vld [vmem:[%s1084 + $0x51] sm:$0xff]
        %v1708 = vld [vmem:[%s1084 + $0x61] sm:$0xff]
        %v1709 = vld [vmem:[%s1084 + $0x69] sm:$0xff]
        %v1710 = vld [vmem:[%s1084 + $0x79] sm:$0xff]
        %v1711 = vld [vmem:[%s1084 + $0x81] sm:$0xff]
        %v1712 = vld [vmem:[%s1084 + $0x91] sm:$0xff]
        %v1713 = vld [vmem:[%s1084 + $0x99] sm:$0xff]
        %v1714 = vld [vmem:[%s1084 + $0xa9] sm:$0xff]
        %v1715 = vld [vmem:[%s1084 + $0xb1] sm:$0xff]
        %v1716 = vld [vmem:[%s1084 + $0xc1] sm:$0xff]
        %v1717 = vld [vmem:[%s1084 + $0xc9] sm:$0xff]
        %v1718 = vld [vmem:[%s1084 + $0xd9] sm:$0xff]
        %v1719 = vld [vmem:[%s1084 + $0xe1] sm:$0xff]
        %v1720 = vld [vmem:[%s1084 + $0xf1] sm:$0xff]
        %v1721 = vld [vmem:[%s1084 + $0xf9] sm:$0xff]
        %v1722 = vld [vmem:[%s1084 + $0x109] sm:$0xff]
        %v1723 = vld [vmem:[%s1084 + $0x111] sm:$0xff]
        %v1724 = vld [vmem:[%s1084 + $0x121] sm:$0xff]
        %v1725 = vld [vmem:[%s1084 + $0x129] sm:$0xff]
        %v1726 = vld [vmem:[%s1084 + $0x139] sm:$0xff]
        %v1727 = vld [vmem:[%s1084 + $0x141] sm:$0xff]
        %v1728 = vld [vmem:[%s1084 + $0x151] sm:$0xff]
        %v1729 = vld [vmem:[%s1084 + $0x159] sm:$0xff]
        %v1730 = vld [vmem:[%s1084 + $0x169] sm:$0xff]
        %v1731 = vld [vmem:[%s1084 + $0x171] sm:$0xff]
        %v1732 = vld [vmem:[%s1] sm:$0xff]
        %v1734 = vsel %vm225, %v1700, 0
        %v1737 = vsel %vm225, %v1701, 0
        %v1740 = vsel %vm225, %v1702, 0
        %v1743 = vsel %vm225, %v1703, 0
        %v1746 = vsel %vm225, %v1704, 0
        %v1749 = vsel %vm225, %v1705, 0
        %v1752 = vsel %vm225, %v1706, 0
        %v1755 = vsel %vm225, %v1707, 0
        %v1758 = vsel %vm225, %v1708, 0
        %v1761 = vsel %vm225, %v1709, 0
        %v1764 = vsel %vm225, %v1710, 0
        %v1767 = vsel %vm225, %v1711, 0
        %v1770 = vsel %vm225, %v1712, 0
        %v1773 = vsel %vm225, %v1713, 0
        %v1776 = vsel %vm225, %v1714, 0
        %v1779 = vsel %vm225, %v1715, 0
        %v1782 = vsel %vm225, %v1716, 0
        %v1785 = vsel %vm225, %v1717, 0
        %v1788 = vsel %vm225, %v1718, 0
        %v1791 = vsel %vm225, %v1719, 0
        %v1794 = vsel %vm225, %v1720, 0
        %v1797 = vsel %vm225, %v1721, 0
        %v1800 = vsel %vm225, %v1722, 0
        %v1803 = vsel %vm225, %v1723, 0
        %v1806 = vsel %vm225, %v1724, 0
        %v1809 = vsel %vm225, %v1725, 0
        %v1812 = vsel %vm225, %v1726, 0
        %v1815 = vsel %vm225, %v1727, 0
        %v1818 = vsel %vm225, %v1728, 0
        %v1821 = vsel %vm225, %v1729, 0
        %v1824 = vsel %vm225, %v1730, 0
        %v1827 = vsel %vm225, %v1731, 0
        %1829 = vmatpush.msra.mxu0 0.0
        %1830 = vmatpush.msra.mxu0 0.0
        %1831 = vmatpush.msra.mxu0 0.0
        %1832 = vmatpush.msra.mxu0 0.0
        %1833 = vmatpush.msra.mxu0 0.0
        %1834 = vmatpush.msra.mxu0 0.0
        %1835 = vmatpush.msra.mxu0 0.0
        %1836 = vmatpush.msra.mxu0 0.0
        %1837 = vmatpush.msra.mxu0 0.0
        %1838 = vmatpush.msra.mxu0 0.0
        %1839 = vmatpush.msra.mxu0 0.0
        %1840 = vmatpush.msra.mxu0 0.0
        %1841 = vmatpush.msra.mxu0 0.0
        %1842 = vmatpush.msra.mxu0 0.0
        %1843 = vmatpush.msra.mxu0 0.0
        %1844 = vmatpush.msra.mxu0 %v1732
        %1845 = vmatmul.f32.gmra.mxu0 %v1734
        %v1846 = vpop.f32.mrf.mxu0
        %v1847 = vadd.f32 %v223, %v1846
        %1848 = vmatmul.f32.gmra.mxu0 %v1737
        %v1849 = vpop.f32.mrf.mxu0
        %v1850 = vadd.f32 %v223, %v1849
        %1851 = vmatmul.f32.gmra.mxu0 %v1740
        %v1852 = vpop.f32.mrf.mxu0
        %v1853 = vadd.f32 %v223, %v1852
        %1854 = vmatmul.f32.gmra.mxu0 %v1743
        %v1855 = vpop.f32.mrf.mxu0
        %v1856 = vadd.f32 %v223, %v1855
        %1857 = vmatmul.f32.gmra.mxu0 %v1746
        %v1858 = vpop.f32.mrf.mxu0
        %v1859 = vadd.f32 %v223, %v1858
        %1860 = vmatmul.f32.gmra.mxu0 %v1749
        %v1861 = vpop.f32.mrf.mxu0
        %v1862 = vadd.f32 %v223, %v1861
        %1863 = vmatmul.f32.gmra.mxu0 %v1752
        %v1864 = vpop.f32.mrf.mxu0
        %v1865 = vadd.f32 %v223, %v1864
        %1866 = vmatmul.f32.gmra.mxu0 %v1755
        %v1867 = vpop.f32.mrf.mxu0
        %v1868 = vadd.f32 %v223, %v1867
        %1869 = vmatmul.f32.gmra.mxu0 %v1758
        %v1870 = vpop.f32.mrf.mxu0
        %v1871 = vadd.f32 %v223, %v1870
        %1872 = vmatmul.f32.gmra.mxu0 %v1761
        %v1873 = vpop.f32.mrf.mxu0
        %v1874 = vadd.f32 %v223, %v1873
        %1875 = vmatmul.f32.gmra.mxu0 %v1764
        %v1876 = vpop.f32.mrf.mxu0
        %v1877 = vadd.f32 %v223, %v1876
        %1878 = vmatmul.f32.gmra.mxu0 %v1767
        %v1879 = vpop.f32.mrf.mxu0
        %v1880 = vadd.f32 %v223, %v1879
        %1881 = vmatmul.f32.gmra.mxu0 %v1770
        %v1882 = vpop.f32.mrf.mxu0
        %v1883 = vadd.f32 %v223, %v1882
        %1884 = vmatmul.f32.gmra.mxu0 %v1773
        %v1885 = vpop.f32.mrf.mxu0
        %v1886 = vadd.f32 %v223, %v1885
        %1887 = vmatmul.f32.gmra.mxu0 %v1776
        %v1888 = vpop.f32.mrf.mxu0
        %v1889 = vadd.f32 %v223, %v1888
        %1890 = vmatmul.f32.gmra.mxu0 %v1779
        %v1891 = vpop.f32.mrf.mxu0
        %v1892 = vadd.f32 %v223, %v1891
        %1893 = vmatmul.f32.gmra.mxu0 %v1782
        %v1894 = vpop.f32.mrf.mxu0
        %v1895 = vadd.f32 %v223, %v1894
        %1896 = vmatmul.f32.gmra.mxu0 %v1785
        %v1897 = vpop.f32.mrf.mxu0
        %v1898 = vadd.f32 %v223, %v1897
        %1899 = vmatmul.f32.gmra.mxu0 %v1788
        %v1900 = vpop.f32.mrf.mxu0
        %v1901 = vadd.f32 %v223, %v1900
        %1902 = vmatmul.f32.gmra.mxu0 %v1791
        %v1903 = vpop.f32.mrf.mxu0
        %v1904 = vadd.f32 %v223, %v1903
        %1905 = vmatmul.f32.gmra.mxu0 %v1794
        %v1906 = vpop.f32.mrf.mxu0
        %v1907 = vadd.f32 %v223, %v1906
        %1908 = vmatmul.f32.gmra.mxu0 %v1797
        %v1909 = vpop.f32.mrf.mxu0
        %v1910 = vadd.f32 %v223, %v1909
        %1911 = vmatmul.f32.gmra.mxu0 %v1800
        %v1912 = vpop.f32.mrf.mxu0
        %v1913 = vadd.f32 %v223, %v1912
        %1914 = vmatmul.f32.gmra.mxu0 %v1803
        %v1915 = vpop.f32.mrf.mxu0
        %v1916 = vadd.f32 %v223, %v1915
        %1917 = vmatmul.f32.gmra.mxu0 %v1806
        %v1918 = vpop.f32.mrf.mxu0
        %v1919 = vadd.f32 %v223, %v1918
        %1920 = vmatmul.f32.gmra.mxu0 %v1809
        %v1921 = vpop.f32.mrf.mxu0
        %v1922 = vadd.f32 %v223, %v1921
        %1923 = vmatmul.f32.gmra.mxu0 %v1812
        %v1924 = vpop.f32.mrf.mxu0
        %v1925 = vadd.f32 %v223, %v1924
        %1926 = vmatmul.f32.gmra.mxu0 %v1815
        %v1927 = vpop.f32.mrf.mxu0
        %v1928 = vadd.f32 %v223, %v1927
        %1929 = vmatmul.f32.gmra.mxu0 %v1818
        %v1930 = vpop.f32.mrf.mxu0
        %v1931 = vadd.f32 %v223, %v1930
        %1932 = vmatmul.f32.gmra.mxu0 %v1821
        %v1933 = vpop.f32.mrf.mxu0
        %v1934 = vadd.f32 %v223, %v1933
        %1935 = vmatmul.f32.gmra.mxu0 %v1824
        %v1936 = vpop.f32.mrf.mxu0
        %v1937 = vadd.f32 %v223, %v1936
        %1938 = vmatmul.f32.gmra.mxu0 %v1827
        %v1939 = vpop.f32.mrf.mxu0
        %v1940 = vadd.f32 %v223, %v1939
        %1941 = vdwg.mxu0
        %1942 = vst [vmem:[#allocation2] sm:$0xff] %v1847
        %1943 = vst [vmem:[#allocation2 + $0x8] sm:$0xff] %v1850
        %1944 = vst [vmem:[#allocation2 + $0x10] sm:$0xff] %v1853
        %1945 = vst [vmem:[#allocation2 + $0x18] sm:$0xff] %v1856
        %1946 = vst [vmem:[#allocation2 + $0x20] sm:$0xff] %v1859
        %1947 = vst [vmem:[#allocation2 + $0x28] sm:$0xff] %v1862
        %1948 = vst [vmem:[#allocation2 + $0x30] sm:$0xff] %v1865
        %1949 = vst [vmem:[#allocation2 + $0x38] sm:$0xff] %v1868
        %1950 = vst [vmem:[#allocation2 + $0x40] sm:$0xff] %v1871
        %1951 = vst [vmem:[#allocation2 + $0x48] sm:$0xff] %v1874
        %1952 = vst [vmem:[#allocation2 + $0x50] sm:$0xff] %v1877
        %1953 = vst [vmem:[#allocation2 + $0x58] sm:$0xff] %v1880
        %1954 = vst [vmem:[#allocation2 + $0x60] sm:$0xff] %v1883
        %1955 = vst [vmem:[#allocation2 + $0x68] sm:$0xff] %v1886
        %1956 = vst [vmem:[#allocation2 + $0x70] sm:$0xff] %v1889
        %1957 = vst [vmem:[#allocation2 + $0x78] sm:$0xff] %v1892
        %1958 = vst [vmem:[#allocation2 + $0x80] sm:$0xff] %v1895
        %1959 = vst [vmem:[#allocation2 + $0x88] sm:$0xff] %v1898
        %1960 = vst [vmem:[#allocation2 + $0x90] sm:$0xff] %v1901
        %1961 = vst [vmem:[#allocation2 + $0x98] sm:$0xff] %v1904
        %1962 = vst [vmem:[#allocation2 + $0xa0] sm:$0xff] %v1907
        %1963 = vst [vmem:[#allocation2 + $0xa8] sm:$0xff] %v1910
        %1964 = vst [vmem:[#allocation2 + $0xb0] sm:$0xff] %v1913
        %1965 = vst [vmem:[#allocation2 + $0xb8] sm:$0xff] %v1916
        %1966 = vst [vmem:[#allocation2 + $0xc0] sm:$0xff] %v1919
        %1967 = vst [vmem:[#allocation2 + $0xc8] sm:$0xff] %v1922
        %1968 = vst [vmem:[#allocation2 + $0xd0] sm:$0xff] %v1925
        %1969 = vst [vmem:[#allocation2 + $0xd8] sm:$0xff] %v1928
        %1970 = vst [vmem:[#allocation2 + $0xe0] sm:$0xff] %v1931
        %1971 = vst [vmem:[#allocation2 + $0xe8] sm:$0xff] %v1934
        %1972 = vst [vmem:[#allocation2 + $0xf0] sm:$0xff] %v1937
        %1973 = vst [vmem:[#allocation2 + $0xf8] sm:$0xff] %v1940
        %v1974 = vld [vmem:[%s1084] sm:$0xff]
        %v1975 = vld [vmem:[%s1084 + $0x8] sm:$0xff]
        %v1976 = vld [vmem:[%s1084 + $0x18] sm:$0xff]
        %v1977 = vld [vmem:[%s1084 + $0x20] sm:$0xff]
        %v1978 = vld [vmem:[%s1084 + $0x30] sm:$0xff]
        %v1979 = vld [vmem:[%s1084 + $0x38] sm:$0xff]
        %v1980 = vld [vmem:[%s1084 + $0x48] sm:$0xff]
        %v1981 = vld [vmem:[%s1084 + $0x50] sm:$0xff]
        %v1982 = vld [vmem:[%s1084 + $0x60] sm:$0xff]
        %v1983 = vld [vmem:[%s1084 + $0x68] sm:$0xff]
        %v1984 = vld [vmem:[%s1084 + $0x78] sm:$0xff]
        %v1985 = vld [vmem:[%s1084 + $0x80] sm:$0xff]
        %v1986 = vld [vmem:[%s1084 + $0x90] sm:$0xff]
        %v1987 = vld [vmem:[%s1084 + $0x98] sm:$0xff]
        %v1988 = vld [vmem:[%s1084 + $0xa8] sm:$0xff]
        %v1989 = vld [vmem:[%s1084 + $0xb0] sm:$0xff]
        %v1990 = vld [vmem:[%s1084 + $0xc0] sm:$0xff]
        %v1991 = vld [vmem:[%s1084 + $0xc8] sm:$0xff]
        %v1992 = vld [vmem:[%s1084 + $0xd8] sm:$0xff]
        %v1993 = vld [vmem:[%s1084 + $0xe0] sm:$0xff]
        %v1994 = vld [vmem:[%s1084 + $0xf0] sm:$0xff]
        %v1995 = vld [vmem:[%s1084 + $0xf8] sm:$0xff]
        %v1996 = vld [vmem:[%s1084 + $0x108] sm:$0xff]
        %v1997 = vld [vmem:[%s1084 + $0x110] sm:$0xff]
        %v1998 = vld [vmem:[%s1084 + $0x120] sm:$0xff]
        %v1999 = vld [vmem:[%s1084 + $0x128] sm:$0xff]
        %v2000 = vld [vmem:[%s1084 + $0x138] sm:$0xff]
        %v2001 = vld [vmem:[%s1084 + $0x140] sm:$0xff]
        %v2002 = vld [vmem:[%s1084 + $0x150] sm:$0xff]
        %v2003 = vld [vmem:[%s1084 + $0x158] sm:$0xff]
        %v2004 = vld [vmem:[%s1084 + $0x168] sm:$0xff]
        %v2005 = vld [vmem:[%s1084 + $0x170] sm:$0xff]
        %s2006 = scalar_lea.vmem %s1, 16
        %v2007 = vld [vmem:[%s2006] sm:$0xff]
        %v2009 = vsel %vm225, %v1974, 0
        %v2012 = vsel %vm225, %v1975, 0
        %v2015 = vsel %vm225, %v1976, 0
        %v2018 = vsel %vm225, %v1977, 0
        %v2021 = vsel %vm225, %v1978, 0
        %v2024 = vsel %vm225, %v1979, 0
        %v2027 = vsel %vm225, %v1980, 0
        %v2030 = vsel %vm225, %v1981, 0
        %v2033 = vsel %vm225, %v1982, 0
        %v2036 = vsel %vm225, %v1983, 0
        %v2039 = vsel %vm225, %v1984, 0
        %v2042 = vsel %vm225, %v1985, 0
        %v2045 = vsel %vm225, %v1986, 0
        %v2048 = vsel %vm225, %v1987, 0
        %v2051 = vsel %vm225, %v1988, 0
        %v2054 = vsel %vm225, %v1989, 0
        %v2057 = vsel %vm225, %v1990, 0
        %v2060 = vsel %vm225, %v1991, 0
        %v2063 = vsel %vm225, %v1992, 0
        %v2066 = vsel %vm225, %v1993, 0
        %v2069 = vsel %vm225, %v1994, 0
        %v2072 = vsel %vm225, %v1995, 0
        %v2075 = vsel %vm225, %v1996, 0
        %v2078 = vsel %vm225, %v1997, 0
        %v2081 = vsel %vm225, %v1998, 0
        %v2084 = vsel %vm225, %v1999, 0
        %v2087 = vsel %vm225, %v2000, 0
        %v2090 = vsel %vm225, %v2001, 0
        %v2093 = vsel %vm225, %v2002, 0
        %v2096 = vsel %vm225, %v2003, 0
        %v2099 = vsel %vm225, %v2004, 0
        %v2102 = vsel %vm225, %v2005, 0
        %2104 = vmatpush.msra.mxu0 0.0
        %2105 = vmatpush.msra.mxu0 0.0
        %2106 = vmatpush.msra.mxu0 0.0
        %2107 = vmatpush.msra.mxu0 0.0
        %2108 = vmatpush.msra.mxu0 0.0
        %2109 = vmatpush.msra.mxu0 0.0
        %2110 = vmatpush.msra.mxu0 0.0
        %2111 = vmatpush.msra.mxu0 0.0
        %2112 = vmatpush.msra.mxu0 0.0
        %2113 = vmatpush.msra.mxu0 0.0
        %2114 = vmatpush.msra.mxu0 0.0
        %2115 = vmatpush.msra.mxu0 0.0
        %2116 = vmatpush.msra.mxu0 0.0
        %2117 = vmatpush.msra.mxu0 0.0
        %2118 = vmatpush.msra.mxu0 0.0
        %2119 = vmatpush.msra.mxu0 %v2007
        %2120 = vmatmul.f32.gmra.mxu0 %v2009
        %v2121 = vpop.f32.mrf.mxu0
        %v2122 = vadd.f32 0.0, %v2121
        %2123 = vmatmul.f32.gmra.mxu0 %v2012
        %v2124 = vpop.f32.mrf.mxu0
        %v2125 = vadd.f32 0.0, %v2124
        %2126 = vmatmul.f32.gmra.mxu0 %v2015
        %v2127 = vpop.f32.mrf.mxu0
        %v2128 = vadd.f32 0.0, %v2127
        %2129 = vmatmul.f32.gmra.mxu0 %v2018
        %v2130 = vpop.f32.mrf.mxu0
        %v2131 = vadd.f32 0.0, %v2130
        %2132 = vmatmul.f32.gmra.mxu0 %v2021
        %v2133 = vpop.f32.mrf.mxu0
        %v2134 = vadd.f32 0.0, %v2133
        %2135 = vmatmul.f32.gmra.mxu0 %v2024
        %v2136 = vpop.f32.mrf.mxu0
        %v2137 = vadd.f32 0.0, %v2136
        %2138 = vmatmul.f32.gmra.mxu0 %v2027
        %v2139 = vpop.f32.mrf.mxu0
        %v2140 = vadd.f32 0.0, %v2139
        %2141 = vmatmul.f32.gmra.mxu0 %v2030
        %v2142 = vpop.f32.mrf.mxu0
        %v2143 = vadd.f32 0.0, %v2142
        %2144 = vmatmul.f32.gmra.mxu0 %v2033
        %v2145 = vpop.f32.mrf.mxu0
        %v2146 = vadd.f32 0.0, %v2145
        %2147 = vmatmul.f32.gmra.mxu0 %v2036
        %v2148 = vpop.f32.mrf.mxu0
        %v2149 = vadd.f32 0.0, %v2148
        %2150 = vmatmul.f32.gmra.mxu0 %v2039
        %v2151 = vpop.f32.mrf.mxu0
        %v2152 = vadd.f32 0.0, %v2151
        %2153 = vmatmul.f32.gmra.mxu0 %v2042
        %v2154 = vpop.f32.mrf.mxu0
        %v2155 = vadd.f32 0.0, %v2154
        %2156 = vmatmul.f32.gmra.mxu0 %v2045
        %v2157 = vpop.f32.mrf.mxu0
        %v2158 = vadd.f32 0.0, %v2157
        %2159 = vmatmul.f32.gmra.mxu0 %v2048
        %v2160 = vpop.f32.mrf.mxu0
        %v2161 = vadd.f32 0.0, %v2160
        %2162 = vmatmul.f32.gmra.mxu0 %v2051
        %v2163 = vpop.f32.mrf.mxu0
        %v2164 = vadd.f32 0.0, %v2163
        %2165 = vmatmul.f32.gmra.mxu0 %v2054
        %v2166 = vpop.f32.mrf.mxu0
        %v2167 = vadd.f32 0.0, %v2166
        %2168 = vmatmul.f32.gmra.mxu0 %v2057
        %v2169 = vpop.f32.mrf.mxu0
        %v2170 = vadd.f32 0.0, %v2169
        %2171 = vmatmul.f32.gmra.mxu0 %v2060
        %v2172 = vpop.f32.mrf.mxu0
        %v2173 = vadd.f32 0.0, %v2172
        %2174 = vmatmul.f32.gmra.mxu0 %v2063
        %v2175 = vpop.f32.mrf.mxu0
        %v2176 = vadd.f32 0.0, %v2175
        %2177 = vmatmul.f32.gmra.mxu0 %v2066
        %v2178 = vpop.f32.mrf.mxu0
        %v2179 = vadd.f32 0.0, %v2178
        %2180 = vmatmul.f32.gmra.mxu0 %v2069
        %v2181 = vpop.f32.mrf.mxu0
        %v2182 = vadd.f32 0.0, %v2181
        %2183 = vmatmul.f32.gmra.mxu0 %v2072
        %v2184 = vpop.f32.mrf.mxu0
        %v2185 = vadd.f32 0.0, %v2184
        %2186 = vmatmul.f32.gmra.mxu0 %v2075
        %v2187 = vpop.f32.mrf.mxu0
        %v2188 = vadd.f32 0.0, %v2187
        %2189 = vmatmul.f32.gmra.mxu0 %v2078
        %v2190 = vpop.f32.mrf.mxu0
        %v2191 = vadd.f32 0.0, %v2190
        %2192 = vmatmul.f32.gmra.mxu0 %v2081
        %v2193 = vpop.f32.mrf.mxu0
        %v2194 = vadd.f32 0.0, %v2193
        %2195 = vmatmul.f32.gmra.mxu0 %v2084
        %v2196 = vpop.f32.mrf.mxu0
        %v2197 = vadd.f32 0.0, %v2196
        %2198 = vmatmul.f32.gmra.mxu0 %v2087
        %v2199 = vpop.f32.mrf.mxu0
        %v2200 = vadd.f32 0.0, %v2199
        %2201 = vmatmul.f32.gmra.mxu0 %v2090
        %v2202 = vpop.f32.mrf.mxu0
        %v2203 = vadd.f32 0.0, %v2202
        %2204 = vmatmul.f32.gmra.mxu0 %v2093
        %v2205 = vpop.f32.mrf.mxu0
        %v2206 = vadd.f32 0.0, %v2205
        %2207 = vmatmul.f32.gmra.mxu0 %v2096
        %v2208 = vpop.f32.mrf.mxu0
        %v2209 = vadd.f32 0.0, %v2208
        %2210 = vmatmul.f32.gmra.mxu0 %v2099
        %v2211 = vpop.f32.mrf.mxu0
        %v2212 = vadd.f32 0.0, %v2211
        %2213 = vmatmul.f32.gmra.mxu0 %v2102
        %v2214 = vpop.f32.mrf.mxu0
        %v2215 = vadd.f32 0.0, %v2214
        %2216 = vdwg.mxu0
        %v2217 = vld [vmem:[#allocation2] sm:$0xff]
        %v2218 = vld [vmem:[#allocation2 + $0x8] sm:$0xff]
        %v2219 = vld [vmem:[#allocation2 + $0x10] sm:$0xff]
        %v2220 = vld [vmem:[#allocation2 + $0x18] sm:$0xff]
        %v2221 = vld [vmem:[#allocation2 + $0x20] sm:$0xff]
        %v2222 = vld [vmem:[#allocation2 + $0x28] sm:$0xff]
        %v2223 = vld [vmem:[#allocation2 + $0x30] sm:$0xff]
        %v2224 = vld [vmem:[#allocation2 + $0x38] sm:$0xff]
        %v2225 = vld [vmem:[#allocation2 + $0x40] sm:$0xff]
        %v2226 = vld [vmem:[#allocation2 + $0x48] sm:$0xff]
        %v2227 = vld [vmem:[#allocation2 + $0x50] sm:$0xff]
        %v2228 = vld [vmem:[#allocation2 + $0x58] sm:$0xff]
        %v2229 = vld [vmem:[#allocation2 + $0x60] sm:$0xff]
        %v2230 = vld [vmem:[#allocation2 + $0x68] sm:$0xff]
        %v2231 = vld [vmem:[#allocation2 + $0x70] sm:$0xff]
        %v2232 = vld [vmem:[#allocation2 + $0x78] sm:$0xff]
        %v2233 = vld [vmem:[#allocation2 + $0x80] sm:$0xff]
        %v2234 = vld [vmem:[#allocation2 + $0x88] sm:$0xff]
        %v2235 = vld [vmem:[#allocation2 + $0x90] sm:$0xff]
        %v2236 = vld [vmem:[#allocation2 + $0x98] sm:$0xff]
        %v2237 = vld [vmem:[#allocation2 + $0xa0] sm:$0xff]
        %v2238 = vld [vmem:[#allocation2 + $0xa8] sm:$0xff]
        %v2239 = vld [vmem:[#allocation2 + $0xb0] sm:$0xff]
        %v2240 = vld [vmem:[#allocation2 + $0xb8] sm:$0xff]
        %v2241 = vld [vmem:[#allocation2 + $0xc0] sm:$0xff]
        %v2242 = vld [vmem:[#allocation2 + $0xc8] sm:$0xff]
        %v2243 = vld [vmem:[#allocation2 + $0xd0] sm:$0xff]
        %v2244 = vld [vmem:[#allocation2 + $0xd8] sm:$0xff]
        %v2245 = vld [vmem:[#allocation2 + $0xe0] sm:$0xff]
        %v2246 = vld [vmem:[#allocation2 + $0xe8] sm:$0xff]
        %v2247 = vld [vmem:[#allocation2 + $0xf0] sm:$0xff]
        %v2248 = vld [vmem:[#allocation2 + $0xf8] sm:$0xff]
        %v2249 = vadd.f32 %v2217, %v2122
        %v2250 = vadd.f32 %v2218, %v2125
        %v2251 = vadd.f32 %v2219, %v2128
        %v2252 = vadd.f32 %v2220, %v2131
        %v2253 = vadd.f32 %v2221, %v2134
        %v2254 = vadd.f32 %v2222, %v2137
        %v2255 = vadd.f32 %v2223, %v2140
        %v2256 = vadd.f32 %v2224, %v2143
        %v2257 = vadd.f32 %v2225, %v2146
        %v2258 = vadd.f32 %v2226, %v2149
        %v2259 = vadd.f32 %v2227, %v2152
        %v2260 = vadd.f32 %v2228, %v2155
        %v2261 = vadd.f32 %v2229, %v2158
        %v2262 = vadd.f32 %v2230, %v2161
        %v2263 = vadd.f32 %v2231, %v2164
        %v2264 = vadd.f32 %v2232, %v2167
        %v2265 = vadd.f32 %v2233, %v2170
        %v2266 = vadd.f32 %v2234, %v2173
        %v2267 = vadd.f32 %v2235, %v2176
        %v2268 = vadd.f32 %v2236, %v2179
        %v2269 = vadd.f32 %v2237, %v2182
        %v2270 = vadd.f32 %v2238, %v2185
        %v2271 = vadd.f32 %v2239, %v2188
        %v2272 = vadd.f32 %v2240, %v2191
        %v2273 = vadd.f32 %v2241, %v2194
        %v2274 = vadd.f32 %v2242, %v2197
        %v2275 = vadd.f32 %v2243, %v2200
        %v2276 = vadd.f32 %v2244, %v2203
        %v2277 = vadd.f32 %v2245, %v2206
        %v2278 = vadd.f32 %v2246, %v2209
        %v2279 = vadd.f32 %v2247, %v2212
        %v2280 = vadd.f32 %v2248, %v2215
        %2281 = vst [vmem:[#allocation2] sm:$0xff] %v2249
        %2282 = vst [vmem:[#allocation2 + $0x8] sm:$0xff] %v2250
        %2283 = vst [vmem:[#allocation2 + $0x10] sm:$0xff] %v2251
        %2284 = vst [vmem:[#allocation2 + $0x18] sm:$0xff] %v2252
        %2285 = vst [vmem:[#allocation2 + $0x20] sm:$0xff] %v2253
        %2286 = vst [vmem:[#allocation2 + $0x28] sm:$0xff] %v2254
        %2287 = vst [vmem:[#allocation2 + $0x30] sm:$0xff] %v2255
        %2288 = vst [vmem:[#allocation2 + $0x38] sm:$0xff] %v2256
        %2289 = vst [vmem:[#allocation2 + $0x40] sm:$0xff] %v2257
        %2290 = vst [vmem:[#allocation2 + $0x48] sm:$0xff] %v2258
        %2291 = vst [vmem:[#allocation2 + $0x50] sm:$0xff] %v2259
        %2292 = vst [vmem:[#allocation2 + $0x58] sm:$0xff] %v2260
        %2293 = vst [vmem:[#allocation2 + $0x60] sm:$0xff] %v2261
        %2294 = vst [vmem:[#allocation2 + $0x68] sm:$0xff] %v2262
        %2295 = vst [vmem:[#allocation2 + $0x70] sm:$0xff] %v2263
        %2296 = vst [vmem:[#allocation2 + $0x78] sm:$0xff] %v2264
        %2297 = vst [vmem:[#allocation2 + $0x80] sm:$0xff] %v2265
        %2298 = vst [vmem:[#allocation2 + $0x88] sm:$0xff] %v2266
        %2299 = vst [vmem:[#allocation2 + $0x90] sm:$0xff] %v2267
        %2300 = vst [vmem:[#allocation2 + $0x98] sm:$0xff] %v2268
        %2301 = vst [vmem:[#allocation2 + $0xa0] sm:$0xff] %v2269
        %2302 = vst [vmem:[#allocation2 + $0xa8] sm:$0xff] %v2270
        %2303 = vst [vmem:[#allocation2 + $0xb0] sm:$0xff] %v2271
        %2304 = vst [vmem:[#allocation2 + $0xb8] sm:$0xff] %v2272
        %2305 = vst [vmem:[#allocation2 + $0xc0] sm:$0xff] %v2273
        %2306 = vst [vmem:[#allocation2 + $0xc8] sm:$0xff] %v2274
        %2307 = vst [vmem:[#allocation2 + $0xd0] sm:$0xff] %v2275
        %2308 = vst [vmem:[#allocation2 + $0xd8] sm:$0xff] %v2276
        %2309 = vst [vmem:[#allocation2 + $0xe0] sm:$0xff] %v2277
        %2310 = vst [vmem:[#allocation2 + $0xe8] sm:$0xff] %v2278
        %2311 = vst [vmem:[#allocation2 + $0xf0] sm:$0xff] %v2279
        %2312 = vst [vmem:[#allocation2 + $0xf8] sm:$0xff] %v2280
        %v2313 = vld [vmem:[%s187 + $0x1] sm:$0xff]
        %v2314 = vld [vmem:[%s187 + $0x9] sm:$0xff]
        %v2315 = vld [vmem:[%s187 + $0x19] sm:$0xff]
        %v2316 = vld [vmem:[%s187 + $0x21] sm:$0xff]
        %v2317 = vld [vmem:[%s187 + $0x31] sm:$0xff]
        %v2318 = vld [vmem:[%s187 + $0x39] sm:$0xff]
        %v2319 = vld [vmem:[%s187 + $0x49] sm:$0xff]
        %v2320 = vld [vmem:[%s187 + $0x51] sm:$0xff]
        %v2321 = vld [vmem:[%s187 + $0x61] sm:$0xff]
        %v2322 = vld [vmem:[%s187 + $0x69] sm:$0xff]
        %v2323 = vld [vmem:[%s187 + $0x79] sm:$0xff]
        %v2324 = vld [vmem:[%s187 + $0x81] sm:$0xff]
        %v2325 = vld [vmem:[%s187 + $0x91] sm:$0xff]
        %v2326 = vld [vmem:[%s187 + $0x99] sm:$0xff]
        %v2327 = vld [vmem:[%s187 + $0xa9] sm:$0xff]
        %v2328 = vld [vmem:[%s187 + $0xb1] sm:$0xff]
        %v2329 = vld [vmem:[%s187 + $0xc1] sm:$0xff]
        %v2330 = vld [vmem:[%s187 + $0xc9] sm:$0xff]
        %v2331 = vld [vmem:[%s187 + $0xd9] sm:$0xff]
        %v2332 = vld [vmem:[%s187 + $0xe1] sm:$0xff]
        %v2333 = vld [vmem:[%s187 + $0xf1] sm:$0xff]
        %v2334 = vld [vmem:[%s187 + $0xf9] sm:$0xff]
        %v2335 = vld [vmem:[%s187 + $0x109] sm:$0xff]
        %v2336 = vld [vmem:[%s187 + $0x111] sm:$0xff]
        %v2337 = vld [vmem:[%s187 + $0x121] sm:$0xff]
        %v2338 = vld [vmem:[%s187 + $0x129] sm:$0xff]
        %v2339 = vld [vmem:[%s187 + $0x139] sm:$0xff]
        %v2340 = vld [vmem:[%s187 + $0x141] sm:$0xff]
        %v2341 = vld [vmem:[%s187 + $0x151] sm:$0xff]
        %v2342 = vld [vmem:[%s187 + $0x159] sm:$0xff]
        %v2343 = vld [vmem:[%s187 + $0x169] sm:$0xff]
        %v2344 = vld [vmem:[%s187 + $0x171] sm:$0xff]
        %s2345 = scalar_lea.vmem %s1, 48
        %v2346 = vld [vmem:[%s2345] sm:$0xff]
        %v2348 = vsel %vm225, %v2313, 0
        %v2351 = vsel %vm225, %v2314, 0
        %v2354 = vsel %vm225, %v2315, 0
        %v2357 = vsel %vm225, %v2316, 0
        %v2360 = vsel %vm225, %v2317, 0
        %v2363 = vsel %vm225, %v2318, 0
        %v2366 = vsel %vm225, %v2319, 0
        %v2369 = vsel %vm225, %v2320, 0
        %v2372 = vsel %vm225, %v2321, 0
        %v2375 = vsel %vm225, %v2322, 0
        %v2378 = vsel %vm225, %v2323, 0
        %v2381 = vsel %vm225, %v2324, 0
        %v2384 = vsel %vm225, %v2325, 0
        %v2387 = vsel %vm225, %v2326, 0
        %v2390 = vsel %vm225, %v2327, 0
        %v2393 = vsel %vm225, %v2328, 0
        %v2396 = vsel %vm225, %v2329, 0
        %v2399 = vsel %vm225, %v2330, 0
        %v2402 = vsel %vm225, %v2331, 0
        %v2405 = vsel %vm225, %v2332, 0
        %v2408 = vsel %vm225, %v2333, 0
        %v2411 = vsel %vm225, %v2334, 0
        %v2414 = vsel %vm225, %v2335, 0
        %v2417 = vsel %vm225, %v2336, 0
        %v2420 = vsel %vm225, %v2337, 0
        %v2423 = vsel %vm225, %v2338, 0
        %v2426 = vsel %vm225, %v2339, 0
        %v2429 = vsel %vm225, %v2340, 0
        %v2432 = vsel %vm225, %v2341, 0
        %v2435 = vsel %vm225, %v2342, 0
        %v2438 = vsel %vm225, %v2343, 0
        %v2441 = vsel %vm225, %v2344, 0
        %2443 = vmatpush.msra.mxu0 0.0
        %2444 = vmatpush.msra.mxu0 0.0
        %2445 = vmatpush.msra.mxu0 0.0
        %2446 = vmatpush.msra.mxu0 0.0
        %2447 = vmatpush.msra.mxu0 0.0
        %2448 = vmatpush.msra.mxu0 0.0
        %2449 = vmatpush.msra.mxu0 0.0
        %2450 = vmatpush.msra.mxu0 0.0
        %2451 = vmatpush.msra.mxu0 0.0
        %2452 = vmatpush.msra.mxu0 0.0
        %2453 = vmatpush.msra.mxu0 0.0
        %2454 = vmatpush.msra.mxu0 0.0
        %2455 = vmatpush.msra.mxu0 0.0
        %2456 = vmatpush.msra.mxu0 0.0
        %2457 = vmatpush.msra.mxu0 0.0
        %2458 = vmatpush.msra.mxu0 %v2346
        %2459 = vmatmul.f32.gmra.mxu0 %v2348
        %v2460 = vpop.f32.mrf.mxu0
        %v2461 = vadd.f32 0.0, %v2460
        %2462 = vmatmul.f32.gmra.mxu0 %v2351
        %v2463 = vpop.f32.mrf.mxu0
        %v2464 = vadd.f32 0.0, %v2463
        %2465 = vmatmul.f32.gmra.mxu0 %v2354
        %v2466 = vpop.f32.mrf.mxu0
        %v2467 = vadd.f32 0.0, %v2466
        %2468 = vmatmul.f32.gmra.mxu0 %v2357
        %v2469 = vpop.f32.mrf.mxu0
        %v2470 = vadd.f32 0.0, %v2469
        %2471 = vmatmul.f32.gmra.mxu0 %v2360
        %v2472 = vpop.f32.mrf.mxu0
        %v2473 = vadd.f32 0.0, %v2472
        %2474 = vmatmul.f32.gmra.mxu0 %v2363
        %v2475 = vpop.f32.mrf.mxu0
        %v2476 = vadd.f32 0.0, %v2475
        %2477 = vmatmul.f32.gmra.mxu0 %v2366
        %v2478 = vpop.f32.mrf.mxu0
        %v2479 = vadd.f32 0.0, %v2478
        %2480 = vmatmul.f32.gmra.mxu0 %v2369
        %v2481 = vpop.f32.mrf.mxu0
        %v2482 = vadd.f32 0.0, %v2481
        %2483 = vmatmul.f32.gmra.mxu0 %v2372
        %v2484 = vpop.f32.mrf.mxu0
        %v2485 = vadd.f32 0.0, %v2484
        %2486 = vmatmul.f32.gmra.mxu0 %v2375
        %v2487 = vpop.f32.mrf.mxu0
        %v2488 = vadd.f32 0.0, %v2487
        %2489 = vmatmul.f32.gmra.mxu0 %v2378
        %v2490 = vpop.f32.mrf.mxu0
        %v2491 = vadd.f32 0.0, %v2490
        %2492 = vmatmul.f32.gmra.mxu0 %v2381
        %v2493 = vpop.f32.mrf.mxu0
        %v2494 = vadd.f32 0.0, %v2493
        %2495 = vmatmul.f32.gmra.mxu0 %v2384
        %v2496 = vpop.f32.mrf.mxu0
        %v2497 = vadd.f32 0.0, %v2496
        %2498 = vmatmul.f32.gmra.mxu0 %v2387
        %v2499 = vpop.f32.mrf.mxu0
        %v2500 = vadd.f32 0.0, %v2499
        %2501 = vmatmul.f32.gmra.mxu0 %v2390
        %v2502 = vpop.f32.mrf.mxu0
        %v2503 = vadd.f32 0.0, %v2502
        %2504 = vmatmul.f32.gmra.mxu0 %v2393
        %v2505 = vpop.f32.mrf.mxu0
        %v2506 = vadd.f32 0.0, %v2505
        %2507 = vmatmul.f32.gmra.mxu0 %v2396
        %v2508 = vpop.f32.mrf.mxu0
        %v2509 = vadd.f32 0.0, %v2508
        %2510 = vmatmul.f32.gmra.mxu0 %v2399
        %v2511 = vpop.f32.mrf.mxu0
        %v2512 = vadd.f32 0.0, %v2511
        %2513 = vmatmul.f32.gmra.mxu0 %v2402
        %v2514 = vpop.f32.mrf.mxu0
        %v2515 = vadd.f32 0.0, %v2514
        %2516 = vmatmul.f32.gmra.mxu0 %v2405
        %v2517 = vpop.f32.mrf.mxu0
        %v2518 = vadd.f32 0.0, %v2517
        %2519 = vmatmul.f32.gmra.mxu0 %v2408
        %v2520 = vpop.f32.mrf.mxu0
        %v2521 = vadd.f32 0.0, %v2520
        %2522 = vmatmul.f32.gmra.mxu0 %v2411
        %v2523 = vpop.f32.mrf.mxu0
        %v2524 = vadd.f32 0.0, %v2523
        %2525 = vmatmul.f32.gmra.mxu0 %v2414
        %v2526 = vpop.f32.mrf.mxu0
        %v2527 = vadd.f32 0.0, %v2526
        %2528 = vmatmul.f32.gmra.mxu0 %v2417
        %v2529 = vpop.f32.mrf.mxu0
        %v2530 = vadd.f32 0.0, %v2529
        %2531 = vmatmul.f32.gmra.mxu0 %v2420
        %v2532 = vpop.f32.mrf.mxu0
        %v2533 = vadd.f32 0.0, %v2532
        %2534 = vmatmul.f32.gmra.mxu0 %v2423
        %v2535 = vpop.f32.mrf.mxu0
        %v2536 = vadd.f32 0.0, %v2535
        %2537 = vmatmul.f32.gmra.mxu0 %v2426
        %v2538 = vpop.f32.mrf.mxu0
        %v2539 = vadd.f32 0.0, %v2538
        %2540 = vmatmul.f32.gmra.mxu0 %v2429
        %v2541 = vpop.f32.mrf.mxu0
        %v2542 = vadd.f32 0.0, %v2541
        %2543 = vmatmul.f32.gmra.mxu0 %v2432
        %v2544 = vpop.f32.mrf.mxu0
        %v2545 = vadd.f32 0.0, %v2544
        %2546 = vmatmul.f32.gmra.mxu0 %v2435
        %v2547 = vpop.f32.mrf.mxu0
        %v2548 = vadd.f32 0.0, %v2547
        %2549 = vmatmul.f32.gmra.mxu0 %v2438
        %v2550 = vpop.f32.mrf.mxu0
        %v2551 = vadd.f32 0.0, %v2550
        %2552 = vmatmul.f32.gmra.mxu0 %v2441
        %v2553 = vpop.f32.mrf.mxu0
        %v2554 = vadd.f32 0.0, %v2553
        %2555 = vdwg.mxu0
        %v2556 = vld [vmem:[#allocation2] sm:$0xff]
        %v2557 = vld [vmem:[#allocation2 + $0x8] sm:$0xff]
        %v2558 = vld [vmem:[#allocation2 + $0x10] sm:$0xff]
        %v2559 = vld [vmem:[#allocation2 + $0x18] sm:$0xff]
        %v2560 = vld [vmem:[#allocation2 + $0x20] sm:$0xff]
        %v2561 = vld [vmem:[#allocation2 + $0x28] sm:$0xff]
        %v2562 = vld [vmem:[#allocation2 + $0x30] sm:$0xff]
        %v2563 = vld [vmem:[#allocation2 + $0x38] sm:$0xff]
        %v2564 = vld [vmem:[#allocation2 + $0x40] sm:$0xff]
        %v2565 = vld [vmem:[#allocation2 + $0x48] sm:$0xff]
        %v2566 = vld [vmem:[#allocation2 + $0x50] sm:$0xff]
        %v2567 = vld [vmem:[#allocation2 + $0x58] sm:$0xff]
        %v2568 = vld [vmem:[#allocation2 + $0x60] sm:$0xff]
        %v2569 = vld [vmem:[#allocation2 + $0x68] sm:$0xff]
        %v2570 = vld [vmem:[#allocation2 + $0x70] sm:$0xff]
        %v2571 = vld [vmem:[#allocation2 + $0x78] sm:$0xff]
        %v2572 = vld [vmem:[#allocation2 + $0x80] sm:$0xff]
        %v2573 = vld [vmem:[#allocation2 + $0x88] sm:$0xff]
        %v2574 = vld [vmem:[#allocation2 + $0x90] sm:$0xff]
        %v2575 = vld [vmem:[#allocation2 + $0x98] sm:$0xff]
        %v2576 = vld [vmem:[#allocation2 + $0xa0] sm:$0xff]
        %v2577 = vld [vmem:[#allocation2 + $0xa8] sm:$0xff]
        %v2578 = vld [vmem:[#allocation2 + $0xb0] sm:$0xff]
        %v2579 = vld [vmem:[#allocation2 + $0xb8] sm:$0xff]
        %v2580 = vld [vmem:[#allocation2 + $0xc0] sm:$0xff]
        %v2581 = vld [vmem:[#allocation2 + $0xc8] sm:$0xff]
        %v2582 = vld [vmem:[#allocation2 + $0xd0] sm:$0xff]
        %v2583 = vld [vmem:[#allocation2 + $0xd8] sm:$0xff]
        %v2584 = vld [vmem:[#allocation2 + $0xe0] sm:$0xff]
        %v2585 = vld [vmem:[#allocation2 + $0xe8] sm:$0xff]
        %v2586 = vld [vmem:[#allocation2 + $0xf0] sm:$0xff]
        %v2587 = vld [vmem:[#allocation2 + $0xf8] sm:$0xff]
        %v2588 = vadd.f32 %v2556, %v2461
        %v2589 = vadd.f32 %v2557, %v2464
        %v2590 = vadd.f32 %v2558, %v2467
        %v2591 = vadd.f32 %v2559, %v2470
        %v2592 = vadd.f32 %v2560, %v2473
        %v2593 = vadd.f32 %v2561, %v2476
        %v2594 = vadd.f32 %v2562, %v2479
        %v2595 = vadd.f32 %v2563, %v2482
        %v2596 = vadd.f32 %v2564, %v2485
        %v2597 = vadd.f32 %v2565, %v2488
        %v2598 = vadd.f32 %v2566, %v2491
        %v2599 = vadd.f32 %v2567, %v2494
        %v2600 = vadd.f32 %v2568, %v2497
        %v2601 = vadd.f32 %v2569, %v2500
        %v2602 = vadd.f32 %v2570, %v2503
        %v2603 = vadd.f32 %v2571, %v2506
        %v2604 = vadd.f32 %v2572, %v2509
        %v2605 = vadd.f32 %v2573, %v2512
        %v2606 = vadd.f32 %v2574, %v2515
        %v2607 = vadd.f32 %v2575, %v2518
        %v2608 = vadd.f32 %v2576, %v2521
        %v2609 = vadd.f32 %v2577, %v2524
        %v2610 = vadd.f32 %v2578, %v2527
        %v2611 = vadd.f32 %v2579, %v2530
        %v2612 = vadd.f32 %v2580, %v2533
        %v2613 = vadd.f32 %v2581, %v2536
        %v2614 = vadd.f32 %v2582, %v2539
        %v2615 = vadd.f32 %v2583, %v2542
        %v2616 = vadd.f32 %v2584, %v2545
        %v2617 = vadd.f32 %v2585, %v2548
        %v2618 = vadd.f32 %v2586, %v2551
        %v2619 = vadd.f32 %v2587, %v2554
        %2620 = vst [vmem:[#allocation2] sm:$0xff] %v2588
        %2621 = vst [vmem:[#allocation2 + $0x8] sm:$0xff] %v2589
        %2622 = vst [vmem:[#allocation2 + $0x10] sm:$0xff] %v2590
        %2623 = vst [vmem:[#allocation2 + $0x18] sm:$0xff] %v2591
        %2624 = vst [vmem:[#allocation2 + $0x20] sm:$0xff] %v2592
        %2625 = vst [vmem:[#allocation2 + $0x28] sm:$0xff] %v2593
        %2626 = vst [vmem:[#allocation2 + $0x30] sm:$0xff] %v2594
        %2627 = vst [vmem:[#allocation2 + $0x38] sm:$0xff] %v2595
        %2628 = vst [vmem:[#allocation2 + $0x40] sm:$0xff] %v2596
        %2629 = vst [vmem:[#allocation2 + $0x48] sm:$0xff] %v2597
        %2630 = vst [vmem:[#allocation2 + $0x50] sm:$0xff] %v2598
        %2631 = vst [vmem:[#allocation2 + $0x58] sm:$0xff] %v2599
        %2632 = vst [vmem:[#allocation2 + $0x60] sm:$0xff] %v2600
        %2633 = vst [vmem:[#allocation2 + $0x68] sm:$0xff] %v2601
        %2634 = vst [vmem:[#allocation2 + $0x70] sm:$0xff] %v2602
        %2635 = vst [vmem:[#allocation2 + $0x78] sm:$0xff] %v2603
        %2636 = vst [vmem:[#allocation2 + $0x80] sm:$0xff] %v2604
        %2637 = vst [vmem:[#allocation2 + $0x88] sm:$0xff] %v2605
        %2638 = vst [vmem:[#allocation2 + $0x90] sm:$0xff] %v2606
        %2639 = vst [vmem:[#allocation2 + $0x98] sm:$0xff] %v2607
        %2640 = vst [vmem:[#allocation2 + $0xa0] sm:$0xff] %v2608
        %2641 = vst [vmem:[#allocation2 + $0xa8] sm:$0xff] %v2609
        %2642 = vst [vmem:[#allocation2 + $0xb0] sm:$0xff] %v2610
        %2643 = vst [vmem:[#allocation2 + $0xb8] sm:$0xff] %v2611
        %2644 = vst [vmem:[#allocation2 + $0xc0] sm:$0xff] %v2612
        %2645 = vst [vmem:[#allocation2 + $0xc8] sm:$0xff] %v2613
        %2646 = vst [vmem:[#allocation2 + $0xd0] sm:$0xff] %v2614
        %2647 = vst [vmem:[#allocation2 + $0xd8] sm:$0xff] %v2615
        %2648 = vst [vmem:[#allocation2 + $0xe0] sm:$0xff] %v2616
        %2649 = vst [vmem:[#allocation2 + $0xe8] sm:$0xff] %v2617
        %2650 = vst [vmem:[#allocation2 + $0xf0] sm:$0xff] %v2618
        %2651 = vst [vmem:[#allocation2 + $0xf8] sm:$0xff] %v2619
        %v2652 = vld [vmem:[%s187] sm:$0xff]
        %v2653 = vld [vmem:[%s187 + $0x8] sm:$0xff]
        %v2654 = vld [vmem:[%s187 + $0x18] sm:$0xff]
        %v2655 = vld [vmem:[%s187 + $0x20] sm:$0xff]
        %v2656 = vld [vmem:[%s187 + $0x30] sm:$0xff]
        %v2657 = vld [vmem:[%s187 + $0x38] sm:$0xff]
        %v2658 = vld [vmem:[%s187 + $0x48] sm:$0xff]
        %v2659 = vld [vmem:[%s187 + $0x50] sm:$0xff]
        %v2660 = vld [vmem:[%s187 + $0x60] sm:$0xff]
        %v2661 = vld [vmem:[%s187 + $0x68] sm:$0xff]
        %v2662 = vld [vmem:[%s187 + $0x78] sm:$0xff]
        %v2663 = vld [vmem:[%s187 + $0x80] sm:$0xff]
        %v2664 = vld [vmem:[%s187 + $0x90] sm:$0xff]
        %v2665 = vld [vmem:[%s187 + $0x98] sm:$0xff]
        %v2666 = vld [vmem:[%s187 + $0xa8] sm:$0xff]
        %v2667 = vld [vmem:[%s187 + $0xb0] sm:$0xff]
        %v2668 = vld [vmem:[%s187 + $0xc0] sm:$0xff]
        %v2669 = vld [vmem:[%s187 + $0xc8] sm:$0xff]
        %v2670 = vld [vmem:[%s187 + $0xd8] sm:$0xff]
        %v2671 = vld [vmem:[%s187 + $0xe0] sm:$0xff]
        %v2672 = vld [vmem:[%s187 + $0xf0] sm:$0xff]
        %v2673 = vld [vmem:[%s187 + $0xf8] sm:$0xff]
        %v2674 = vld [vmem:[%s187 + $0x108] sm:$0xff]
        %v2675 = vld [vmem:[%s187 + $0x110] sm:$0xff]
        %v2676 = vld [vmem:[%s187 + $0x120] sm:$0xff]
        %v2677 = vld [vmem:[%s187 + $0x128] sm:$0xff]
        %v2678 = vld [vmem:[%s187 + $0x138] sm:$0xff]
        %v2679 = vld [vmem:[%s187 + $0x140] sm:$0xff]
        %v2680 = vld [vmem:[%s187 + $0x150] sm:$0xff]
        %v2681 = vld [vmem:[%s187 + $0x158] sm:$0xff]
        %v2682 = vld [vmem:[%s187 + $0x168] sm:$0xff]
        %v2683 = vld [vmem:[%s187 + $0x170] sm:$0xff]
        %s2684 = scalar_lea.vmem %s1, 64
        %v2685 = vld [vmem:[%s2684] sm:$0xff]
        %v2687 = vsel %vm225, %v2652, 0
        %v2690 = vsel %vm225, %v2653, 0
        %v2693 = vsel %vm225, %v2654, 0
        %v2696 = vsel %vm225, %v2655, 0
        %v2699 = vsel %vm225, %v2656, 0
        %v2702 = vsel %vm225, %v2657, 0
        %v2705 = vsel %vm225, %v2658, 0
        %v2708 = vsel %vm225, %v2659, 0
        %v2711 = vsel %vm225, %v2660, 0
        %v2714 = vsel %vm225, %v2661, 0
        %v2717 = vsel %vm225, %v2662, 0
        %v2720 = vsel %vm225, %v2663, 0
        %v2723 = vsel %vm225, %v2664, 0
        %v2726 = vsel %vm225, %v2665, 0
        %v2729 = vsel %vm225, %v2666, 0
        %v2732 = vsel %vm225, %v2667, 0
        %v2735 = vsel %vm225, %v2668, 0
        %v2738 = vsel %vm225, %v2669, 0
        %v2741 = vsel %vm225, %v2670, 0
        %v2744 = vsel %vm225, %v2671, 0
        %v2747 = vsel %vm225, %v2672, 0
        %v2750 = vsel %vm225, %v2673, 0
        %v2753 = vsel %vm225, %v2674, 0
        %v2756 = vsel %vm225, %v2675, 0
        %v2759 = vsel %vm225, %v2676, 0
        %v2762 = vsel %vm225, %v2677, 0
        %v2765 = vsel %vm225, %v2678, 0
        %v2768 = vsel %vm225, %v2679, 0
        %v2771 = vsel %vm225, %v2680, 0
        %v2774 = vsel %vm225, %v2681, 0
        %v2777 = vsel %vm225, %v2682, 0
        %v2780 = vsel %vm225, %v2683, 0
        %2782 = vmatpush.msra.mxu0 0.0
        %2783 = vmatpush.msra.mxu0 0.0
        %2784 = vmatpush.msra.mxu0 0.0
        %2785 = vmatpush.msra.mxu0 0.0
        %2786 = vmatpush.msra.mxu0 0.0
        %2787 = vmatpush.msra.mxu0 0.0
        %2788 = vmatpush.msra.mxu0 0.0
        %2789 = vmatpush.msra.mxu0 0.0
        %2790 = vmatpush.msra.mxu0 0.0
        %2791 = vmatpush.msra.mxu0 0.0
        %2792 = vmatpush.msra.mxu0 0.0
        %2793 = vmatpush.msra.mxu0 0.0
        %2794 = vmatpush.msra.mxu0 0.0
        %2795 = vmatpush.msra.mxu0 0.0
        %2796 = vmatpush.msra.mxu0 0.0
        %2797 = vmatpush.msra.mxu0 %v2685
        %2798 = vmatmul.f32.gmra.mxu0 %v2687
        %v2799 = vpop.f32.mrf.mxu0
        %v2800 = vadd.f32 0.0, %v2799
        %2801 = vmatmul.f32.gmra.mxu0 %v2690
        %v2802 = vpop.f32.mrf.mxu0
        %v2803 = vadd.f32 0.0, %v2802
        %2804 = vmatmul.f32.gmra.mxu0 %v2693
        %v2805 = vpop.f32.mrf.mxu0
        %v2806 = vadd.f32 0.0, %v2805
        %2807 = vmatmul.f32.gmra.mxu0 %v2696
        %v2808 = vpop.f32.mrf.mxu0
        %v2809 = vadd.f32 0.0, %v2808
        %2810 = vmatmul.f32.gmra.mxu0 %v2699
        %v2811 = vpop.f32.mrf.mxu0
        %v2812 = vadd.f32 0.0, %v2811
        %2813 = vmatmul.f32.gmra.mxu0 %v2702
        %v2814 = vpop.f32.mrf.mxu0
        %v2815 = vadd.f32 0.0, %v2814
        %2816 = vmatmul.f32.gmra.mxu0 %v2705
        %v2817 = vpop.f32.mrf.mxu0
        %v2818 = vadd.f32 0.0, %v2817
        %2819 = vmatmul.f32.gmra.mxu0 %v2708
        %v2820 = vpop.f32.mrf.mxu0
        %v2821 = vadd.f32 0.0, %v2820
        %2822 = vmatmul.f32.gmra.mxu0 %v2711
        %v2823 = vpop.f32.mrf.mxu0
        %v2824 = vadd.f32 0.0, %v2823
        %2825 = vmatmul.f32.gmra.mxu0 %v2714
        %v2826 = vpop.f32.mrf.mxu0
        %v2827 = vadd.f32 0.0, %v2826
        %2828 = vmatmul.f32.gmra.mxu0 %v2717
        %v2829 = vpop.f32.mrf.mxu0
        %v2830 = vadd.f32 0.0, %v2829
        %2831 = vmatmul.f32.gmra.mxu0 %v2720
        %v2832 = vpop.f32.mrf.mxu0
        %v2833 = vadd.f32 0.0, %v2832
        %2834 = vmatmul.f32.gmra.mxu0 %v2723
        %v2835 = vpop.f32.mrf.mxu0
        %v2836 = vadd.f32 0.0, %v2835
        %2837 = vmatmul.f32.gmra.mxu0 %v2726
        %v2838 = vpop.f32.mrf.mxu0
        %v2839 = vadd.f32 0.0, %v2838
        %2840 = vmatmul.f32.gmra.mxu0 %v2729
        %v2841 = vpop.f32.mrf.mxu0
        %v2842 = vadd.f32 0.0, %v2841
        %2843 = vmatmul.f32.gmra.mxu0 %v2732
        %v2844 = vpop.f32.mrf.mxu0
        %v2845 = vadd.f32 0.0, %v2844
        %2846 = vmatmul.f32.gmra.mxu0 %v2735
        %v2847 = vpop.f32.mrf.mxu0
        %v2848 = vadd.f32 0.0, %v2847
        %2849 = vmatmul.f32.gmra.mxu0 %v2738
        %v2850 = vpop.f32.mrf.mxu0
        %v2851 = vadd.f32 0.0, %v2850
        %2852 = vmatmul.f32.gmra.mxu0 %v2741
        %v2853 = vpop.f32.mrf.mxu0
        %v2854 = vadd.f32 0.0, %v2853
        %2855 = vmatmul.f32.gmra.mxu0 %v2744
        %v2856 = vpop.f32.mrf.mxu0
        %v2857 = vadd.f32 0.0, %v2856
        %2858 = vmatmul.f32.gmra.mxu0 %v2747
        %v2859 = vpop.f32.mrf.mxu0
        %v2860 = vadd.f32 0.0, %v2859
        %2861 = vmatmul.f32.gmra.mxu0 %v2750
        %v2862 = vpop.f32.mrf.mxu0
        %v2863 = vadd.f32 0.0, %v2862
        %2864 = vmatmul.f32.gmra.mxu0 %v2753
        %v2865 = vpop.f32.mrf.mxu0
        %v2866 = vadd.f32 0.0, %v2865
        %2867 = vmatmul.f32.gmra.mxu0 %v2756
        %v2868 = vpop.f32.mrf.mxu0
        %v2869 = vadd.f32 0.0, %v2868
        %2870 = vmatmul.f32.gmra.mxu0 %v2759
        %v2871 = vpop.f32.mrf.mxu0
        %v2872 = vadd.f32 0.0, %v2871
        %2873 = vmatmul.f32.gmra.mxu0 %v2762
        %v2874 = vpop.f32.mrf.mxu0
        %v2875 = vadd.f32 0.0, %v2874
        %2876 = vmatmul.f32.gmra.mxu0 %v2765
        %v2877 = vpop.f32.mrf.mxu0
        %v2878 = vadd.f32 0.0, %v2877
        %2879 = vmatmul.f32.gmra.mxu0 %v2768
        %v2880 = vpop.f32.mrf.mxu0
        %v2881 = vadd.f32 0.0, %v2880
        %2882 = vmatmul.f32.gmra.mxu0 %v2771
        %v2883 = vpop.f32.mrf.mxu0
        %v2884 = vadd.f32 0.0, %v2883
        %2885 = vmatmul.f32.gmra.mxu0 %v2774
        %v2886 = vpop.f32.mrf.mxu0
        %v2887 = vadd.f32 0.0, %v2886
        %2888 = vmatmul.f32.gmra.mxu0 %v2777
        %v2889 = vpop.f32.mrf.mxu0
        %v2890 = vadd.f32 0.0, %v2889
        %2891 = vmatmul.f32.gmra.mxu0 %v2780
        %v2892 = vpop.f32.mrf.mxu0
        %v2893 = vadd.f32 0.0, %v2892
        %2894 = vdwg.mxu0
        %v2895 = vld [vmem:[#allocation2] sm:$0xff]
        %v2896 = vld [vmem:[#allocation2 + $0x8] sm:$0xff]
        %v2897 = vld [vmem:[#allocation2 + $0x10] sm:$0xff]
        %v2898 = vld [vmem:[#allocation2 + $0x18] sm:$0xff]
        %v2899 = vld [vmem:[#allocation2 + $0x20] sm:$0xff]
        %v2900 = vld [vmem:[#allocation2 + $0x28] sm:$0xff]
        %v2901 = vld [vmem:[#allocation2 + $0x30] sm:$0xff]
        %v2902 = vld [vmem:[#allocation2 + $0x38] sm:$0xff]
        %v2903 = vld [vmem:[#allocation2 + $0x40] sm:$0xff]
        %v2904 = vld [vmem:[#allocation2 + $0x48] sm:$0xff]
        %v2905 = vld [vmem:[#allocation2 + $0x50] sm:$0xff]
        %v2906 = vld [vmem:[#allocation2 + $0x58] sm:$0xff]
        %v2907 = vld [vmem:[#allocation2 + $0x60] sm:$0xff]
        %v2908 = vld [vmem:[#allocation2 + $0x68] sm:$0xff]
        %v2909 = vld [vmem:[#allocation2 + $0x70] sm:$0xff]
        %v2910 = vld [vmem:[#allocation2 + $0x78] sm:$0xff]
        %v2911 = vld [vmem:[#allocation2 + $0x80] sm:$0xff]
        %v2912 = vld [vmem:[#allocation2 + $0x88] sm:$0xff]
        %v2913 = vld [vmem:[#allocation2 + $0x90] sm:$0xff]
        %v2914 = vld [vmem:[#allocation2 + $0x98] sm:$0xff]
        %v2915 = vld [vmem:[#allocation2 + $0xa0] sm:$0xff]
        %v2916 = vld [vmem:[#allocation2 + $0xa8] sm:$0xff]
        %v2917 = vld [vmem:[#allocation2 + $0xb0] sm:$0xff]
        %v2918 = vld [vmem:[#allocation2 + $0xb8] sm:$0xff]
        %v2919 = vld [vmem:[#allocation2 + $0xc0] sm:$0xff]
        %v2920 = vld [vmem:[#allocation2 + $0xc8] sm:$0xff]
        %v2921 = vld [vmem:[#allocation2 + $0xd0] sm:$0xff]
        %v2922 = vld [vmem:[#allocation2 + $0xd8] sm:$0xff]
        %v2923 = vld [vmem:[#allocation2 + $0xe0] sm:$0xff]
        %v2924 = vld [vmem:[#allocation2 + $0xe8] sm:$0xff]
        %v2925 = vld [vmem:[#allocation2 + $0xf0] sm:$0xff]
        %v2926 = vld [vmem:[#allocation2 + $0xf8] sm:$0xff]
        %v2927 = vadd.f32 %v2895, %v2800
        %v2928 = vadd.f32 %v2896, %v2803
        %v2929 = vadd.f32 %v2897, %v2806
        %v2930 = vadd.f32 %v2898, %v2809
        %v2931 = vadd.f32 %v2899, %v2812
        %v2932 = vadd.f32 %v2900, %v2815
        %v2933 = vadd.f32 %v2901, %v2818
        %v2934 = vadd.f32 %v2902, %v2821
        %v2935 = vadd.f32 %v2903, %v2824
        %v2936 = vadd.f32 %v2904, %v2827
        %v2937 = vadd.f32 %v2905, %v2830
        %v2938 = vadd.f32 %v2906, %v2833
        %v2939 = vadd.f32 %v2907, %v2836
        %v2940 = vadd.f32 %v2908, %v2839
        %v2941 = vadd.f32 %v2909, %v2842
        %v2942 = vadd.f32 %v2910, %v2845
        %v2943 = vadd.f32 %v2911, %v2848
        %v2944 = vadd.f32 %v2912, %v2851
        %v2945 = vadd.f32 %v2913, %v2854
        %v2946 = vadd.f32 %v2914, %v2857
        %v2947 = vadd.f32 %v2915, %v2860
        %v2948 = vadd.f32 %v2916, %v2863
        %v2949 = vadd.f32 %v2917, %v2866
        %v2950 = vadd.f32 %v2918, %v2869
        %v2951 = vadd.f32 %v2919, %v2872
        %v2952 = vadd.f32 %v2920, %v2875
        %v2953 = vadd.f32 %v2921, %v2878
        %v2954 = vadd.f32 %v2922, %v2881
        %v2955 = vadd.f32 %v2923, %v2884
        %v2956 = vadd.f32 %v2924, %v2887
        %v2957 = vadd.f32 %v2925, %v2890
        %v2958 = vadd.f32 %v2926, %v2893
        %s2959 = scalar_lea.vmem %s177, 768 [#allocation3]
        %2960 = vst [vmem:[%s2959] sm:$0xff] %v2927
        %2961 = vst [vmem:[%s2959 + $0x8] sm:$0xff] %v2928
        %2962 = vst [vmem:[%s2959 + $0x10] sm:$0xff] %v2929
        %2963 = vst [vmem:[%s2959 + $0x18] sm:$0xff] %v2930
        %2964 = vst [vmem:[%s2959 + $0x20] sm:$0xff] %v2931
        %2965 = vst [vmem:[%s2959 + $0x28] sm:$0xff] %v2932
        %2966 = vst [vmem:[%s2959 + $0x30] sm:$0xff] %v2933
        %2967 = vst [vmem:[%s2959 + $0x38] sm:$0xff] %v2934
        %2968 = vst [vmem:[%s2959 + $0x40] sm:$0xff] %v2935
        %2969 = vst [vmem:[%s2959 + $0x48] sm:$0xff] %v2936
        %2970 = vst [vmem:[%s2959 + $0x50] sm:$0xff] %v2937
        %2971 = vst [vmem:[%s2959 + $0x58] sm:$0xff] %v2938
        %2972 = vst [vmem:[%s2959 + $0x60] sm:$0xff] %v2939
        %2973 = vst [vmem:[%s2959 + $0x68] sm:$0xff] %v2940
        %2974 = vst [vmem:[%s2959 + $0x70] sm:$0xff] %v2941
        %2975 = vst [vmem:[%s2959 + $0x78] sm:$0xff] %v2942
        %2976 = vst [vmem:[%s2959 + $0x80] sm:$0xff] %v2943
        %2977 = vst [vmem:[%s2959 + $0x88] sm:$0xff] %v2944
        %2978 = vst [vmem:[%s2959 + $0x90] sm:$0xff] %v2945
        %2979 = vst [vmem:[%s2959 + $0x98] sm:$0xff] %v2946
        %2980 = vst [vmem:[%s2959 + $0xa0] sm:$0xff] %v2947
        %2981 = vst [vmem:[%s2959 + $0xa8] sm:$0xff] %v2948
        %2982 = vst [vmem:[%s2959 + $0xb0] sm:$0xff] %v2949
        %2983 = vst [vmem:[%s2959 + $0xb8] sm:$0xff] %v2950
        %2984 = vst [vmem:[%s2959 + $0xc0] sm:$0xff] %v2951
        %2985 = vst [vmem:[%s2959 + $0xc8] sm:$0xff] %v2952
        %2986 = vst [vmem:[%s2959 + $0xd0] sm:$0xff] %v2953
        %2987 = vst [vmem:[%s2959 + $0xd8] sm:$0xff] %v2954
        %2988 = vst [vmem:[%s2959 + $0xe0] sm:$0xff] %v2955
        %2989 = vst [vmem:[%s2959 + $0xe8] sm:$0xff] %v2956
        %2990 = vst [vmem:[%s2959 + $0xf0] sm:$0xff] %v2957
        %2991 = vst [vmem:[%s2959 + $0xf8] sm:$0xff] %v2958
        %s2992 = sand.u32 %s107, 1
        %s2993 = scalar_lea.sflag [#allocation4], %s2992
        %s2994 = sand.u32 %s107, 1
        %s2995 = smul.addr %s2994, 1024
        %s2996 = scalar_lea.vmem [#allocation3], %s2995
        // Predicated region
        $region33: #{tpu_custom_call.1} parent=31 // pred_check
          %p2997 = pneg %p117
        $region34: #{tpu_custom_call.1} parent=31 // pred_check_branch
          %2999 = sbr.rel (%p2997) target = $region36
        $region35: #{tpu_custom_call.1} parent=31 // pred_region
          %s3000 = smul.u32 32, %s22
          %3002 = vsyncadd %s2993, 0
          %s3003 = smul.addr %s21, 128
          %s3004 = sadd.s32 %s3000, %s3003
          %s3005 = smul.addr %s3004, 8
          %s3006 = scalar_lea.hbm %s3, %s3005
          %s3007 = sshll.u32 %s2996, 4
          %s3008 = int_to_ptr.vmem [resolvable:$true] %s3007
          %s3009 = sshll.u32 %s3006, 4
          %s3010 = int_to_ptr.hbm [resolvable:$true] %s3009
          %3015 = dma.vmem_to_hbm [thread:$0]  %s3008, 16384, %s3010, %s2993, 128, 128, 8
        $region36: #{tpu_custom_call.1} parent=31 // pred_fallthru
          _
      $region32: #{tpu_custom_call.1} parent=5 // pred_fallthru
        _
      %p3016 = scmp.le.s32.totalorder 2, %s12
      // Predicated region
      $region37: #{tpu_custom_call.1} parent=5 // pred_check
        %p3017 = pneg %p3016
      $region38: #{tpu_custom_call.1} parent=5 // pred_check_branch
        %3019 = sbr.rel (%p3017) target = $region40
      $region39: #{tpu_custom_call.1} parent=5 // pred_region
        %s3020 = ssub.s32 %s12, 2
        // Predicated region
        $region41: #{tpu_custom_call.1} parent=39 // pred_check
          %p3021 = pneg %p123
        $region42: #{tpu_custom_call.1} parent=39 // pred_check_branch
          %3023 = sbr.rel (%p3021) target = $region44
        $region43: #{tpu_custom_call.1} parent=39 // pred_region
          %s3024 = sand.u32 %s108, 1
          %s3025 = scalar_lea.sflag [#allocation4], %s3024
          %s3026 = sand.u32 %s108, 1
          %s3027 = smul.addr %s3026, 1024
          %s3028 = scalar_lea.vmem [#allocation3], %s3027
          %3030 = dma.done %s3025, 16384
        $region44: #{tpu_custom_call.1} parent=39 // pred_fallthru
          _
      $region40: #{tpu_custom_call.1} parent=5 // pred_fallthru
        _
    $region6: #{tpu_custom_call.1} parent=1 // loop_footer
      %s16 = sadd.s32 1, %s12
    $region7: #{tpu_custom_call.1} parent=1 // loop_footer_branch
      %11 = sbr.rel target = $region3
    $region8: #{tpu_custom_call.1} parent=1 // loop_exit
      _
    %3031 = vsyncpa [#allocation4], 1
    %s3032 = scalar_lea.sflag [#allocation4], 1
    %3033 = vsyncpa %s3032, 1

</llo_original>
